<compile_context>
chip_gen: v7x
topology: tpu7x:2x2x1
jax: 0.10.0
libtpu: 0.0.40
codegen_flags: <defaults>
</compile_context>

<pallas_src>
import math

import jax
import jax.numpy as jnp
from jax.experimental import pallas as pl
from jax.experimental.pallas import tpu as pltpu


def ae_kernel(x_ref,
              we1_ref, be1_ref, we2_ref, be2_ref,
              wd1_ref, bd1_ref, wd2_ref, bd2_ref,
              z_ref, xhat_ref):
    """Fused encoder + decoder for one (TB, D) batch tile.

    Weights arrive as bf16 VMEM-resident blocks; all matmuls accumulate in f32
    on the MXU; biases and the latent z stay f32, x_hat is stored as bf16.
    """
    x = x_ref[...].astype(jnp.bfloat16)                         # [TB, D]

    # ---- encoder ----
    h = jnp.dot(x, we1_ref[...], preferred_element_type=jnp.float32)
    h = jnp.maximum(h + be1_ref[...], 0.0)                      # ReLU, [TB, H]
    z = jnp.dot(h.astype(jnp.bfloat16), we2_ref[...],
                preferred_element_type=jnp.float32)
    z = z + be2_ref[...]                                        # [TB, Lp]
    z_ref[...] = z.astype(z_ref.dtype)

    # ---- decoder ----
    h2 = jnp.dot(z.astype(jnp.bfloat16), wd1_ref[...],
                 preferred_element_type=jnp.float32)
    h2 = jnp.maximum(h2 + bd1_ref[...], 0.0)                    # ReLU, [TB, H]
    xh = jnp.dot(h2.astype(jnp.bfloat16), wd2_ref[...],
                 preferred_element_type=jnp.float32)
    xh = xh + bd2_ref[...]                                      # [TB, D]
    xhat_ref[...] = xh.astype(xhat_ref.dtype)                   # bf16 store


def _round_up(n, m):
    return ((n + m - 1) // m) * m


def ae_forward(x_nchw, params, *, tb=256):
    """Flatten NCHW -> [B, D], pad batch/latent to TPU-friendly sizes, run the
    fused Pallas kernel over a batch grid, slice the padding back off."""
    B = x_nchw.shape[0]
    D = math.prod(x_nchw.shape[1:])
    # Pass the caller's dtype through (no forced f32 upcast); the kernel casts
    # to bf16 internally either way.
    x = x_nchw.reshape(B, D)

    we1, be1, we2, be2, wd1, bd1, wd2, bd2 = params
    H = we1.shape[1]
    L = we2.shape[1]

    LANE, SUBLANE = 128, 8

    # ---- lane-dense latent: pad L up to a multiple of 128 (zero padding is exact)
    Lp = _round_up(max(L, LANE), LANE)
    if Lp != L:
        we2 = jnp.pad(we2, ((0, 0), (0, Lp - L)))
        be2 = jnp.pad(be2, ((0, 0), (0, Lp - L)))
        wd1 = jnp.pad(wd1, ((0, Lp - L), (0, 0)))

    # ---- batch tiling:
    #   * small batches: pad only to the 8-row sublane (no 64x wasted work),
    #   * large batches: tb rows per tile (default 256 -> full-width MXU M-dim
    #     on v6e/v7x, low per-step overhead), and make sure the grid has >=2
    #     "parallel" programs so both v7x TensorCores get work.
    Bp8 = _round_up(B, SUBLANE)
    tb_eff = min(tb, Bp8)
    if Bp8 <= tb_eff and Bp8 >= 2 * SUBLANE:
        tb_eff = _round_up(Bp8 // 2, SUBLANE)   # split a single tile into ~2
    Bp = _round_up(Bp8, tb_eff)
    if Bp != B:
        x = jnp.pad(x, ((0, Bp - B), (0, 0)))

    # ---- bf16 weights (f32 accumulation happens on the MXU inside the kernel)
    we1b = we1.astype(jnp.bfloat16)
    we2b = we2.astype(jnp.bfloat16)
    wd1b = wd1.astype(jnp.bfloat16)
    wd2b = wd2.astype(jnp.bfloat16)

    grid = (Bp // tb_eff,)

    flops = 2 * Bp * (D * H + H * Lp + Lp * H + H * D)
    bytes_accessed = (
        x.size * x.dtype.itemsize                               # input (caller dtype)
        + (we1b.size + we2b.size + wd1b.size + wd2b.size) * 2   # bf16 weights
        + (be1.size + be2.size + bd1.size + bd2.size) * 4       # f32 biases
        + Bp * Lp * 4                                           # z  (f32)
        + Bp * D * 2                                            # x_hat (bf16)
    )

    # TODO(synk): for large D/H where we1 (D,H) / wd2 (H,D) no longer fit VMEM
    # (v7x's 64 MiB first), single-buffer the resident weights and add a
    # K-reduction grid axis over D (accumulator + pl.when init/finalize,
    # marked "arbitrary") plus an N-tiled axis for the last matmul.
    z_pad, xhat_pad = pl.pallas_call(
        ae_kernel,
        out_shape=(
            jax.ShapeDtypeStruct((Bp, Lp), jnp.float32),
            jax.ShapeDtypeStruct((Bp, D), jnp.bfloat16),
        ),
        grid=grid,
        in_specs=[
            pl.BlockSpec((tb_eff, D), lambda i: (i, 0)),  # x batch tile (pipelined)
            pl.BlockSpec((D, H), lambda i: (0, 0)),       # we1 (VMEM-resident)
            pl.BlockSpec((1, H), lambda i: (0, 0)),       # be1
            pl.BlockSpec((H, Lp), lambda i: (0, 0)),      # we2
            pl.BlockSpec((1, Lp), lambda i: (0, 0)),      # be2
            pl.BlockSpec((Lp, H), lambda i: (0, 0)),      # wd1
            pl.BlockSpec((1, H), lambda i: (0, 0)),       # bd1
            pl.BlockSpec((H, D), lambda i: (0, 0)),       # wd2
            pl.BlockSpec((1, D), lambda i: (0, 0)),       # bd2
        ],
        out_specs=(
            pl.BlockSpec((tb_eff, Lp), lambda i: (i, 0)),
            pl.BlockSpec((tb_eff, D), lambda i: (i, 0)),
        ),
        compiler_params=pltpu.CompilerParams(
            dimension_semantics=("parallel",)),
        cost_estimate=pl.CostEstimate(
            flops=flops, transcendentals=0, bytes_accessed=bytes_accessed),
    )(x, we1b, be1, we2b, be2, wd1b, bd1, wd2b, bd2)

    return z_pad[:B, :L], xhat_pad[:B, :D]


def init_params(key, d_in, d_hidden, d_latent):
    """Deterministic synthetic weights (PyTorch Linear-style uniform init)."""
    ks = jax.random.split(key, 8)

    def lin(kw, kb, fan_in, fan_out):
        bound = 1.0 / jnp.sqrt(fan_in)
        w = jax.random.uniform(kw, (fan_in, fan_out), jnp.float32, -bound, bound)
        b = jax.random.uniform(kb, (1, fan_out), jnp.float32, -bound, bound)
        return w, b

    we1, be1 = lin(ks[0], ks[1], d_in, d_hidden)
    we2, be2 = lin(ks[2], ks[3], d_hidden, d_latent)
    wd1, bd1 = lin(ks[4], ks[5], d_latent, d_hidden)
    wd2, bd2 = lin(ks[6], ks[7], d_hidden, d_in)
    return (we1, be1, we2, be2, wd1, bd1, wd2, bd2)


def ae_reference(x_nchw, params):
    """Pure-JAX reference (same bf16 weight quantization, f32 activations)."""
    we1, be1, we2, be2, wd1, bd1, wd2, bd2 = params
    q = lambda w: w.astype(jnp.bfloat16).astype(jnp.float32)
    B = x_nchw.shape[0]
    x = x_nchw.reshape(B, -1).astype(jnp.float32)
    h = jnp.maximum(x @ q(we1) + be1, 0.0)
    z = h @ q(we2) + be2
    h2 = jnp.maximum(z @ q(wd1) + bd1, 0.0)
    x_hat = h2 @ q(wd2) + bd2
    return z, x_hat


if __name__ == "__main__":
    # Small shapes: batch=2, channels=4, spatial=16x16 -> D=1024; hidden=128; latent=32.
    B, C, H, W = 2, 4, 16, 16
    D = C * H * W
    HID, LAT = 128, 32

    key = jax.random.PRNGKey(0)
    k_x, k_p = jax.random.split(key)
    x = jax.random.normal(k_x, (B, C, H, W), jnp.float32)
    params = init_params(k_p, D, HID, LAT)

    z, x_hat = jax.block_until_ready(ae_forward(x, params))

    # Sanity check against pure-JAX reference (bf16 activation casts and the
    # bf16 x_hat store mean a looser tolerance than pure f32).
    z_ref, x_hat_ref = ae_reference(x, params)
    assert z.shape == (B, LAT) and x_hat.shape == (B, D)
    assert z.dtype == jnp.float32 and x_hat.dtype == jnp.bfloat16
    assert jnp.allclose(z, z_ref, atol=2e-2, rtol=2e-2)
    assert jnp.allclose(x_hat.astype(jnp.float32), x_hat_ref, atol=3e-2, rtol=3e-2)

    print("KERNEL_OK")
</pallas_src>

<mosaic_0001>
module attributes {stable_mosaic.version = 11 : i64} {
  func.func @ae_kernel(%arg0: i32, %arg1: memref<8x1024xf32, #tpu.memory_space<vmem>>, %arg2: memref<1024x128xbf16, #tpu.memory_space<vmem>>, %arg3: memref<1x128xf32, #tpu.memory_space<vmem>>, %arg4: memref<128x128xbf16, #tpu.memory_space<vmem>>, %arg5: memref<1x128xf32, #tpu.memory_space<vmem>>, %arg6: memref<128x128xbf16, #tpu.memory_space<vmem>>, %arg7: memref<1x128xf32, #tpu.memory_space<vmem>>, %arg8: memref<128x1024xbf16, #tpu.memory_space<vmem>>, %arg9: memref<1x1024xf32, #tpu.memory_space<vmem>>, %arg10: memref<8x128xf32, #tpu.memory_space<vmem>>, %arg11: memref<8x1024xbf16, #tpu.memory_space<vmem>>) attributes {dimension_semantics = [#tpu.dimension_semantics<parallel>], iteration_bounds = array<i64: 1>, scalar_prefetch = 0 : i64, scratch_operands = 0 : i64, tpu.core_type = #tpu.core_type<tc>, window_params = [{transform_indices = @transform_0, window_bounds = array<i64: 8, 1024>}, {pipeline_mode = #tpu.pipeline_mode<synchronous>, transform_indices = @transform_1, window_bounds = array<i64: 1024, 128>}, {pipeline_mode = #tpu.pipeline_mode<synchronous>, transform_indices = @transform_2, window_bounds = array<i64: 1, 128>}, {pipeline_mode = #tpu.pipeline_mode<synchronous>, transform_indices = @transform_3, window_bounds = array<i64: 128, 128>}, {pipeline_mode = #tpu.pipeline_mode<synchronous>, transform_indices = @transform_4, window_bounds = array<i64: 1, 128>}, {pipeline_mode = #tpu.pipeline_mode<synchronous>, transform_indices = @transform_5, window_bounds = array<i64: 128, 128>}, {pipeline_mode = #tpu.pipeline_mode<synchronous>, transform_indices = @transform_6, window_bounds = array<i64: 1, 128>}, {pipeline_mode = #tpu.pipeline_mode<synchronous>, transform_indices = @transform_7, window_bounds = array<i64: 128, 1024>}, {pipeline_mode = #tpu.pipeline_mode<synchronous>, transform_indices = @transform_8, window_bounds = array<i64: 1, 1024>}, {transform_indices = @transform_9, window_bounds = array<i64: 8, 128>}, {transform_indices = @transform_10, window_bounds = array<i64: 8, 1024>}]} {
    %c0 = arith.constant 0 : index
    %c0_0 = arith.constant 0 : index
    %0 = vector.load %arg1[%c0, %c0_0] : memref<8x1024xf32, #tpu.memory_space<vmem>>, vector<8x1024xf32>
    %1 = arith.truncf %0 : vector<8x1024xf32> to vector<8x1024xbf16>
    %c0_1 = arith.constant 0 : index
    %c0_2 = arith.constant 0 : index
    %2 = vector.load %arg2[%c0_1, %c0_2] : memref<1024x128xbf16, #tpu.memory_space<vmem>>, vector<1024x128xbf16>
    %cst = arith.constant dense<0.000000e+00> : vector<8x128xf32>
    %3 = tpu.matmul %1, %2, %cst {dimension_numbers = #tpu.dot_dimension_numbers<[1], [0], [0], [1], [0, 0, 1, 1], [], []>} : vector<8x1024xbf16>, vector<1024x128xbf16>, vector<8x128xf32> -> vector<8x128xf32>
    %c0_3 = arith.constant 0 : index
    %c0_4 = arith.constant 0 : index
    %4 = vector.load %arg3[%c0_3, %c0_4] : memref<1x128xf32, #tpu.memory_space<vmem>>, vector<1x128xf32>
    %5 = vector.broadcast %4 : vector<1x128xf32> to vector<8x128xf32>
    %6 = arith.addf %3, %5 : vector<8x128xf32>
    %cst_5 = arith.constant 0.000000e+00 : f32
    %7 = vector.broadcast %cst_5 : f32 to vector<8x128xf32>
    %8 = arith.maximumf %6, %7 : vector<8x128xf32>
    %9 = arith.truncf %8 : vector<8x128xf32> to vector<8x128xbf16>
    %c0_6 = arith.constant 0 : index
    %c0_7 = arith.constant 0 : index
    %10 = vector.load %arg4[%c0_6, %c0_7] : memref<128x128xbf16, #tpu.memory_space<vmem>>, vector<128x128xbf16>
    %cst_8 = arith.constant dense<0.000000e+00> : vector<8x128xf32>
    %11 = tpu.matmul %9, %10, %cst_8 {dimension_numbers = #tpu.dot_dimension_numbers<[1], [0], [0], [1], [0, 0, 1, 1], [], []>} : vector<8x128xbf16>, vector<128x128xbf16>, vector<8x128xf32> -> vector<8x128xf32>
    %c0_9 = arith.constant 0 : index
    %c0_10 = arith.constant 0 : index
    %12 = vector.load %arg5[%c0_9, %c0_10] : memref<1x128xf32, #tpu.memory_space<vmem>>, vector<1x128xf32>
    %13 = vector.broadcast %12 : vector<1x128xf32> to vector<8x128xf32>
    %14 = arith.addf %11, %13 : vector<8x128xf32>
    %c0_11 = arith.constant 0 : index
    %c0_12 = arith.constant 0 : index
    %15 = vector.load %arg10[%c0_11, %c0_12] : memref<8x128xf32, #tpu.memory_space<vmem>>, vector<8x128xf32>
    tpu.vector_store %arg10[%c0_11, %c0_12], %14 {strides = array<i32>} : memref<8x128xf32, #tpu.memory_space<vmem>>, vector<8x128xf32>,
    %16 = arith.truncf %14 : vector<8x128xf32> to vector<8x128xbf16>
    %c0_13 = arith.constant 0 : index
    %c0_14 = arith.constant 0 : index
    %17 = vector.load %arg6[%c0_13, %c0_14] : memref<128x128xbf16, #tpu.memory_space<vmem>>, vector<128x128xbf16>
    %cst_15 = arith.constant dense<0.000000e+00> : vector<8x128xf32>
    %18 = tpu.matmul %16, %17, %cst_15 {dimension_numbers = #tpu.dot_dimension_numbers<[1], [0], [0], [1], [0, 0, 1, 1], [], []>} : vector<8x128xbf16>, vector<128x128xbf16>, vector<8x128xf32> -> vector<8x128xf32>
    %c0_16 = arith.constant 0 : index
    %c0_17 = arith.constant 0 : index
    %19 = vector.load %arg7[%c0_16, %c0_17] : memref<1x128xf32, #tpu.memory_space<vmem>>, vector<1x128xf32>
    %20 = vector.broadcast %19 : vector<1x128xf32> to vector<8x128xf32>
    %21 = arith.addf %18, %20 : vector<8x128xf32>
    %cst_18 = arith.constant 0.000000e+00 : f32
    %22 = vector.broadcast %cst_18 : f32 to vector<8x128xf32>
    %23 = arith.maximumf %21, %22 : vector<8x128xf32>
    %24 = arith.truncf %23 : vector<8x128xf32> to vector<8x128xbf16>
    %c0_19 = arith.constant 0 : index
    %c0_20 = arith.constant 0 : index
    %25 = vector.load %arg8[%c0_19, %c0_20] : memref<128x1024xbf16, #tpu.memory_space<vmem>>, vector<128x1024xbf16>
    %cst_21 = arith.constant dense<0.000000e+00> : vector<8x1024xf32>
    %26 = tpu.matmul %24, %25, %cst_21 {dimension_numbers = #tpu.dot_dimension_numbers<[1], [0], [0], [1], [0, 0, 1, 1], [], []>} : vector<8x128xbf16>, vector<128x1024xbf16>, vector<8x1024xf32> -> vector<8x1024xf32>
    %c0_22 = arith.constant 0 : index
    %c0_23 = arith.constant 0 : index
    %27 = vector.load %arg9[%c0_22, %c0_23] : memref<1x1024xf32, #tpu.memory_space<vmem>>, vector<1x1024xf32>
    %28 = vector.broadcast %27 : vector<1x1024xf32> to vector<8x1024xf32>
    %29 = arith.addf %26, %28 : vector<8x1024xf32>
    %30 = arith.truncf %29 : vector<8x1024xf32> to vector<8x1024xbf16>
    %c0_24 = arith.constant 0 : index
    %c0_25 = arith.constant 0 : index
    %31 = vector.load %arg11[%c0_24, %c0_25] : memref<8x1024xbf16, #tpu.memory_space<vmem>>, vector<8x1024xbf16>
    tpu.vector_store %arg11[%c0_24, %c0_25], %30 {strides = array<i32>} : memref<8x1024xbf16, #tpu.memory_space<vmem>>, vector<8x1024xbf16>,
    return
  }
  func.func @transform_0(%arg0: i32) -> (i32, i32) {
    %c0_i32 = arith.constant 0 : i32
    %c0_i32_0 = arith.constant 0 : i32
    return %arg0, %c0_i32 : i32, i32
  }
  func.func @transform_1(%arg0: i32) -> (i32, i32) {
    %c0_i32 = arith.constant 0 : i32
    %c0_i32_0 = arith.constant 0 : i32
    %c0_i32_1 = arith.constant 0 : i32
    return %c0_i32, %c0_i32_0 : i32, i32
  }
  func.func @transform_2(%arg0: i32) -> (i32, i32) {
    %c0_i32 = arith.constant 0 : i32
    %c0_i32_0 = arith.constant 0 : i32
    %c0_i32_1 = arith.constant 0 : i32
    return %c0_i32, %c0_i32_0 : i32, i32
  }
  func.func @transform_3(%arg0: i32) -> (i32, i32) {
    %c0_i32 = arith.constant 0 : i32
    %c0_i32_0 = arith.constant 0 : i32
    %c0_i32_1 = arith.constant 0 : i32
    return %c0_i32, %c0_i32_0 : i32, i32
  }
  func.func @transform_4(%arg0: i32) -> (i32, i32) {
    %c0_i32 = arith.constant 0 : i32
    %c0_i32_0 = arith.constant 0 : i32
    %c0_i32_1 = arith.constant 0 : i32
    return %c0_i32, %c0_i32_0 : i32, i32
  }
  func.func @transform_5(%arg0: i32) -> (i32, i32) {
    %c0_i32 = arith.constant 0 : i32
    %c0_i32_0 = arith.constant 0 : i32
    %c0_i32_1 = arith.constant 0 : i32
    return %c0_i32, %c0_i32_0 : i32, i32
  }
  func.func @transform_6(%arg0: i32) -> (i32, i32) {
    %c0_i32 = arith.constant 0 : i32
    %c0_i32_0 = arith.constant 0 : i32
    %c0_i32_1 = arith.constant 0 : i32
    return %c0_i32, %c0_i32_0 : i32, i32
  }
  func.func @transform_7(%arg0: i32) -> (i32, i32) {
    %c0_i32 = arith.constant 0 : i32
    %c0_i32_0 = arith.constant 0 : i32
    %c0_i32_1 = arith.constant 0 : i32
    return %c0_i32, %c0_i32_0 : i32, i32
  }
  func.func @transform_8(%arg0: i32) -> (i32, i32) {
    %c0_i32 = arith.constant 0 : i32
    %c0_i32_0 = arith.constant 0 : i32
    %c0_i32_1 = arith.constant 0 : i32
    return %c0_i32, %c0_i32_0 : i32, i32
  }
  func.func @transform_9(%arg0: i32) -> (i32, i32) {
    %c0_i32 = arith.constant 0 : i32
    %c0_i32_0 = arith.constant 0 : i32
    return %arg0, %c0_i32 : i32, i32
  }
  func.func @transform_10(%arg0: i32) -> (i32, i32) {
    %c0_i32 = arith.constant 0 : i32
    %c0_i32_0 = arith.constant 0 : i32
    return %arg0, %c0_i32 : i32, i32
  }
}

</mosaic_0001>

<llo_original>
// kernel: tpu_custom_call.1
$region0: #{tpu_custom_call.1}
  #allocation0 [shape = 'u32[]', space=smem, size = 0x4, offset = 0x4, fixed_abs, tag = 'smem constant byte address 0x4 - core index']
  #allocation1 [shape = 'u32[144,128]{1,0:T(1,128)}', space=vmem, size = 0x12000, scoped, tag = 'internal scratch']
  %s0 = inlined_call_operand.hbm [shape: f32[8,1024], index: 0, kind: input, shape index: {}]
  %s1 = inlined_call_operand.hbm [shape: bf16[1024,128], index: 1, kind: input, shape index: {}]
  %s2 = inlined_call_operand.vmem [shape: f32[1,128], index: 2, kind: input, shape index: {}]
  %s3 = inlined_call_operand.hbm [shape: bf16[128,128], index: 3, kind: input, shape index: {}]
  %s4 = inlined_call_operand.vmem [shape: f32[1,128], index: 4, kind: input, shape index: {}]
  %s5 = inlined_call_operand.hbm [shape: bf16[128,128], index: 5, kind: input, shape index: {}]
  %s6 = inlined_call_operand.vmem [shape: f32[1,128], index: 6, kind: input, shape index: {}]
  %s7 = inlined_call_operand.hbm [shape: bf16[128,1024], index: 7, kind: input, shape index: {}]
  %s8 = inlined_call_operand.vmem [shape: f32[1,1024], index: 8, kind: input, shape index: {}]
  %s9 = inlined_call_operand.hbm [shape: f32[8,128], index: 9, kind: output, shape index: {0}]
  %s10 = inlined_call_operand.hbm [shape: bf16[8,1024], index: 10, kind: output, shape index: {1}]
  %11 = xla_tuple %s9, %s10
  %s12 = sld [smem:[#allocation0]]
  $region74: #{tpu_custom_call.1} parent=0
    _
  %s14 = ssub.s32 1, %s12
  %s15 = scalar_select 0, %s14, %s12
  $region1: #{tpu_custom_call.1} parent=0
    #allocation2 [shape = 'u8[32768]{0}', space=vmem, size = 0x8000, scoped, tag = 'input window, operand 0, single buffered']
    #allocation3 [shape = 's32[1]{0}', space=sflag, size = 0x4, scoped, tag = 'scoped memory for tpu_custom_call.1']
    #allocation4 [shape = 's32[1]{0}', space=sflag, size = 0x4, scoped, tag = 'scoped memory for tpu_custom_call.1']
    #allocation5 [shape = 'u8[262144]{0}', space=vmem, size = 0x40000, scoped, tag = 'input window, operand 1, single buffered']
    #allocation6 [shape = 's32[1]{0}', space=sflag, size = 0x4, scoped, tag = 'scoped memory for tpu_custom_call.1']
    #allocation7 [shape = 'u8[32768]{0}', space=vmem, size = 0x8000, scoped, tag = 'input window, operand 3, single buffered']
    #allocation8 [shape = 'u8[32768]{0}', space=vmem, size = 0x8000, scoped, tag = 'input window, operand 5, single buffered']
    #allocation9 [shape = 's32[1]{0}', space=sflag, size = 0x4, scoped, tag = 'scoped memory for tpu_custom_call.1']
    #allocation10 [shape = 'u8[262144]{0}', space=vmem, size = 0x40000, scoped, tag = 'input window, operand 7, single buffered']
    #allocation11 [shape = 'u8[4096]{0}', space=vmem, size = 0x1000, scoped, tag = 'output window, operand 0, single buffered']
    #allocation12 [shape = 'u8[16384]{0}', space=vmem, size = 0x4000, scoped, tag = 'output window, operand 1, single buffered']
    #allocation13 [shape = 's32[1]{0}', space=sflag, size = 0x4, scoped, tag = 'scoped memory for tpu_custom_call.1']
    %16 = vsyncpa [#allocation3], 0
    %17 = vsyncpa [#allocation6], 0
    %18 = vsyncpa [#allocation9], 0
    %19 = vsyncpa [#allocation4], 0
    %20 = vsyncpa [#allocation13], 0
    // Predicated region
    $region2: #{tpu_custom_call.1} parent=1 // pred_check
      _
    $region3: #{tpu_custom_call.1} parent=1 // pred_check_branch
      %22 = sbr.rel (0) target = $region5
    $region4: #{tpu_custom_call.1} parent=1 // pred_region
      %s24 = ssub.s32 1024, 1024
      %25 = vsyncadd [#allocation3], %s24
      %s27 = sshll.u32 [#allocation2], 4
      %s28 = int_to_ptr.vmem [resolvable:$true] %s27
      %30 = dma.hbm_to_vmem [thread:$0]  %s0, 1024, %s28, [#allocation3]
    $region5: #{tpu_custom_call.1} parent=1 // pred_fallthru
      _
    // Predicated region
    $region6: #{tpu_custom_call.1} parent=1 // pred_check
      _
    $region7: #{tpu_custom_call.1} parent=1 // pred_check_branch
      %32 = sbr.rel (0) target = $region9
    $region8: #{tpu_custom_call.1} parent=1 // pred_region
      %s34 = ssub.s32 8192, 8192
      %35 = vsyncadd [#allocation6], %s34
      %s36 = sshll.u32 [#allocation5], 4
      %s37 = int_to_ptr.vmem [resolvable:$true] %s36
      %42 = dma.hbm_to_vmem [thread:$0]  %s1, 8192, %s37, [#allocation6], 64, 64, 4
    $region9: #{tpu_custom_call.1} parent=1 // pred_fallthru
      _
    // Predicated region
    $region10: #{tpu_custom_call.1} parent=1 // pred_check
      _
    $region11: #{tpu_custom_call.1} parent=1 // pred_check_branch
      %44 = sbr.rel (0) target = $region13
    $region12: #{tpu_custom_call.1} parent=1 // pred_region
      _
    $region13: #{tpu_custom_call.1} parent=1 // pred_fallthru
      _
    // Predicated region
    $region14: #{tpu_custom_call.1} parent=1 // pred_check
      _
    $region15: #{tpu_custom_call.1} parent=1 // pred_check_branch
      %46 = sbr.rel (0) target = $region17
    $region16: #{tpu_custom_call.1} parent=1 // pred_region
      %s48 = ssub.s32 1024, 1024
      %49 = vsyncadd [#allocation6], %s48
      %s50 = sshll.u32 [#allocation7], 4
      %s51 = int_to_ptr.vmem [resolvable:$true] %s50
      %56 = dma.hbm_to_vmem [thread:$0]  %s3, 1024, %s51, [#allocation6], 64, 64, 4
    $region17: #{tpu_custom_call.1} parent=1 // pred_fallthru
      _
    // Predicated region
    $region18: #{tpu_custom_call.1} parent=1 // pred_check
      _
    $region19: #{tpu_custom_call.1} parent=1 // pred_check_branch
      %58 = sbr.rel (0) target = $region21
    $region20: #{tpu_custom_call.1} parent=1 // pred_region
      _
    $region21: #{tpu_custom_call.1} parent=1 // pred_fallthru
      _
    // Predicated region
    $region22: #{tpu_custom_call.1} parent=1 // pred_check
      _
    $region23: #{tpu_custom_call.1} parent=1 // pred_check_branch
      %60 = sbr.rel (0) target = $region25
    $region24: #{tpu_custom_call.1} parent=1 // pred_region
      %s62 = ssub.s32 1024, 1024
      %63 = vsyncadd [#allocation9], %s62
      %s64 = sshll.u32 [#allocation8], 4
      %s65 = int_to_ptr.vmem [resolvable:$true] %s64
      %70 = dma.hbm_to_vmem [thread:$0]  %s5, 1024, %s65, [#allocation9], 64, 64, 4
    $region25: #{tpu_custom_call.1} parent=1 // pred_fallthru
      _
    // Predicated region
    $region26: #{tpu_custom_call.1} parent=1 // pred_check
      _
    $region27: #{tpu_custom_call.1} parent=1 // pred_check_branch
      %72 = sbr.rel (0) target = $region29
    $region28: #{tpu_custom_call.1} parent=1 // pred_region
      _
    $region29: #{tpu_custom_call.1} parent=1 // pred_fallthru
      _
    // Predicated region
    $region30: #{tpu_custom_call.1} parent=1 // pred_check
      _
    $region31: #{tpu_custom_call.1} parent=1 // pred_check_branch
      %74 = sbr.rel (0) target = $region33
    $region32: #{tpu_custom_call.1} parent=1 // pred_region
      %s76 = ssub.s32 8192, 8192
      %77 = vsyncadd [#allocation9], %s76
      %s78 = sshll.u32 [#allocation10], 4
      %s79 = int_to_ptr.vmem [resolvable:$true] %s78
      %84 = dma.hbm_to_vmem [thread:$0]  %s7, 8192, %s79, [#allocation9], 512, 512, 32
    $region33: #{tpu_custom_call.1} parent=1 // pred_fallthru
      _
    // Predicated region
    $region34: #{tpu_custom_call.1} parent=1 // pred_check
      _
    $region35: #{tpu_custom_call.1} parent=1 // pred_check_branch
      %86 = sbr.rel (0) target = $region37
    $region36: #{tpu_custom_call.1} parent=1 // pred_region
      _
    $region37: #{tpu_custom_call.1} parent=1 // pred_fallthru
      _
    // Predicated region
    $region38: #{tpu_custom_call.1} parent=1 // pred_check
      _
    $region39: #{tpu_custom_call.1} parent=1 // pred_check_branch
      %88 = sbr.rel (0) target = $region41
    $region40: #{tpu_custom_call.1} parent=1 // pred_region
      %89 = dma.done [#allocation3], 1024
    $region41: #{tpu_custom_call.1} parent=1 // pred_fallthru
      _
    // Predicated region
    $region42: #{tpu_custom_call.1} parent=1 // pred_check
      _
    $region43: #{tpu_custom_call.1} parent=1 // pred_check_branch
      %91 = sbr.rel (0) target = $region45
    $region44: #{tpu_custom_call.1} parent=1 // pred_region
      %92 = dma.done [#allocation6], 8192
    $region45: #{tpu_custom_call.1} parent=1 // pred_fallthru
      _
    // Predicated region
    $region46: #{tpu_custom_call.1} parent=1 // pred_check
      _
    $region47: #{tpu_custom_call.1} parent=1 // pred_check_branch
      %94 = sbr.rel (0) target = $region49
    $region48: #{tpu_custom_call.1} parent=1 // pred_region
      %95 = dma.done [#allocation6], 1024
    $region49: #{tpu_custom_call.1} parent=1 // pred_fallthru
      _
    // Predicated region
    $region50: #{tpu_custom_call.1} parent=1 // pred_check
      _
    $region51: #{tpu_custom_call.1} parent=1 // pred_check_branch
      %97 = sbr.rel (0) target = $region53
    $region52: #{tpu_custom_call.1} parent=1 // pred_region
      %98 = dma.done [#allocation9], 1024
    $region53: #{tpu_custom_call.1} parent=1 // pred_fallthru
      _
    // Predicated region
    $region54: #{tpu_custom_call.1} parent=1 // pred_check
      _
    $region55: #{tpu_custom_call.1} parent=1 // pred_check_branch
      %100 = sbr.rel (0) target = $region57
    $region56: #{tpu_custom_call.1} parent=1 // pred_region
      %101 = dma.done [#allocation9], 8192
    $region57: #{tpu_custom_call.1} parent=1 // pred_fallthru
      _
    %v103 = vld [vmem:[#allocation2] sm:$0xff]
    %v104 = vld [vmem:[#allocation2 + $0x8] sm:$0xff]
    %v105 = vld [vmem:[#allocation2 + $0x10] sm:$0xff]
    %v106 = vld [vmem:[#allocation2 + $0x18] sm:$0xff]
    %v107 = vld [vmem:[#allocation2 + $0x20] sm:$0xff]
    %v108 = vld [vmem:[#allocation2 + $0x28] sm:$0xff]
    %v109 = vld [vmem:[#allocation2 + $0x30] sm:$0xff]
    %v110 = vld [vmem:[#allocation2 + $0x38] sm:$0xff]
    %v111 = vpack.c.bf16 %v103, %v103
    %v112 = vpack.c.bf16 %v104, %v104
    %v113 = vpack.c.bf16 %v105, %v105
    %v114 = vpack.c.bf16 %v106, %v106
    %v115 = vpack.c.bf16 %v107, %v107
    %v116 = vpack.c.bf16 %v108, %v108
    %v117 = vpack.c.bf16 %v109, %v109
    %v118 = vpack.c.bf16 %v110, %v110
    %v119 = vld [vmem:[#allocation5] sm:$0xf]
    %v120 = vld [vmem:[#allocation5 + $0x4] sm:$0xf]
    %v121 = vld [vmem:[#allocation5 + $0x8] sm:$0xf]
    %v122 = vld [vmem:[#allocation5 + $0xc] sm:$0xf]
    %v123 = vld [vmem:[#allocation5 + $0x10] sm:$0xf]
    %v124 = vld [vmem:[#allocation5 + $0x14] sm:$0xf]
    %v125 = vld [vmem:[#allocation5 + $0x18] sm:$0xf]
    %v126 = vld [vmem:[#allocation5 + $0x1c] sm:$0xf]
    %v127 = vld [vmem:[#allocation5 + $0x20] sm:$0xf]
    %v128 = vld [vmem:[#allocation5 + $0x24] sm:$0xf]
    %v129 = vld [vmem:[#allocation5 + $0x28] sm:$0xf]
    %v130 = vld [vmem:[#allocation5 + $0x2c] sm:$0xf]
    %v131 = vld [vmem:[#allocation5 + $0x30] sm:$0xf]
    %v132 = vld [vmem:[#allocation5 + $0x34] sm:$0xf]
    %v133 = vld [vmem:[#allocation5 + $0x38] sm:$0xf]
    %v134 = vld [vmem:[#allocation5 + $0x3c] sm:$0xf]
    %v135 = vld [vmem:[#allocation5 + $0x40] sm:$0xf]
    %v136 = vld [vmem:[#allocation5 + $0x44] sm:$0xf]
    %v137 = vld [vmem:[#allocation5 + $0x48] sm:$0xf]
    %v138 = vld [vmem:[#allocation5 + $0x4c] sm:$0xf]
    %v139 = vld [vmem:[#allocation5 + $0x50] sm:$0xf]
    %v140 = vld [vmem:[#allocation5 + $0x54] sm:$0xf]
    %v141 = vld [vmem:[#allocation5 + $0x58] sm:$0xf]
    %v142 = vld [vmem:[#allocation5 + $0x5c] sm:$0xf]
    %v143 = vld [vmem:[#allocation5 + $0x60] sm:$0xf]
    %v144 = vld [vmem:[#allocation5 + $0x64] sm:$0xf]
    %v145 = vld [vmem:[#allocation5 + $0x68] sm:$0xf]
    %v146 = vld [vmem:[#allocation5 + $0x6c] sm:$0xf]
    %v147 = vld [vmem:[#allocation5 + $0x70] sm:$0xf]
    %v148 = vld [vmem:[#allocation5 + $0x74] sm:$0xf]
    %v149 = vld [vmem:[#allocation5 + $0x78] sm:$0xf]
    %v150 = vld [vmem:[#allocation5 + $0x7c] sm:$0xf]
    %v151 = vld [vmem:[#allocation5 + $0x80] sm:$0xf]
    %v152 = vld [vmem:[#allocation5 + $0x84] sm:$0xf]
    %v153 = vld [vmem:[#allocation5 + $0x88] sm:$0xf]
    %v154 = vld [vmem:[#allocation5 + $0x8c] sm:$0xf]
    %v155 = vld [vmem:[#allocation5 + $0x90] sm:$0xf]
    %v156 = vld [vmem:[#allocation5 + $0x94] sm:$0xf]
    %v157 = vld [vmem:[#allocation5 + $0x98] sm:$0xf]
    %v158 = vld [vmem:[#allocation5 + $0x9c] sm:$0xf]
    %v159 = vld [vmem:[#allocation5 + $0xa0] sm:$0xf]
    %v160 = vld [vmem:[#allocation5 + $0xa4] sm:$0xf]
    %v161 = vld [vmem:[#allocation5 + $0xa8] sm:$0xf]
    %v162 = vld [vmem:[#allocation5 + $0xac] sm:$0xf]
    %v163 = vld [vmem:[#allocation5 + $0xb0] sm:$0xf]
    %v164 = vld [vmem:[#allocation5 + $0xb4] sm:$0xf]
    %v165 = vld [vmem:[#allocation5 + $0xb8] sm:$0xf]
    %v166 = vld [vmem:[#allocation5 + $0xbc] sm:$0xf]
    %v167 = vld [vmem:[#allocation5 + $0xc0] sm:$0xf]
    %v168 = vld [vmem:[#allocation5 + $0xc4] sm:$0xf]
    %v169 = vld [vmem:[#allocation5 + $0xc8] sm:$0xf]
    %v170 = vld [vmem:[#allocation5 + $0xcc] sm:$0xf]
    %v171 = vld [vmem:[#allocation5 + $0xd0] sm:$0xf]
    %v172 = vld [vmem:[#allocation5 + $0xd4] sm:$0xf]
    %v173 = vld [vmem:[#allocation5 + $0xd8] sm:$0xf]
    %v174 = vld [vmem:[#allocation5 + $0xdc] sm:$0xf]
    %v175 = vld [vmem:[#allocation5 + $0xe0] sm:$0xf]
    %v176 = vld [vmem:[#allocation5 + $0xe4] sm:$0xf]
    %v177 = vld [vmem:[#allocation5 + $0xe8] sm:$0xf]
    %v178 = vld [vmem:[#allocation5 + $0xec] sm:$0xf]
    %v179 = vld [vmem:[#allocation5 + $0xf0] sm:$0xf]
    %v180 = vld [vmem:[#allocation5 + $0xf4] sm:$0xf]
    %v181 = vld [vmem:[#allocation5 + $0xf8] sm:$0xf]
    %v182 = vld [vmem:[#allocation5 + $0xfc] sm:$0xf]
    %v183 = vld [vmem:[#allocation5 + $0x100] sm:$0xf]
    %v184 = vld [vmem:[#allocation5 + $0x104] sm:$0xf]
    %v185 = vld [vmem:[#allocation5 + $0x108] sm:$0xf]
    %v186 = vld [vmem:[#allocation5 + $0x10c] sm:$0xf]
    %v187 = vld [vmem:[#allocation5 + $0x110] sm:$0xf]
    %v188 = vld [vmem:[#allocation5 + $0x114] sm:$0xf]
    %v189 = vld [vmem:[#allocation5 + $0x118] sm:$0xf]
    %v190 = vld [vmem:[#allocation5 + $0x11c] sm:$0xf]
    %v191 = vld [vmem:[#allocation5 + $0x120] sm:$0xf]
    %v192 = vld [vmem:[#allocation5 + $0x124] sm:$0xf]
    %v193 = vld [vmem:[#allocation5 + $0x128] sm:$0xf]
    %v194 = vld [vmem:[#allocation5 + $0x12c] sm:$0xf]
    %v195 = vld [vmem:[#allocation5 + $0x130] sm:$0xf]
    %v196 = vld [vmem:[#allocation5 + $0x134] sm:$0xf]
    %v197 = vld [vmem:[#allocation5 + $0x138] sm:$0xf]
    %v198 = vld [vmem:[#allocation5 + $0x13c] sm:$0xf]
    %v199 = vld [vmem:[#allocation5 + $0x140] sm:$0xf]
    %v200 = vld [vmem:[#allocation5 + $0x144] sm:$0xf]
    %v201 = vld [vmem:[#allocation5 + $0x148] sm:$0xf]
    %v202 = vld [vmem:[#allocation5 + $0x14c] sm:$0xf]
    %v203 = vld [vmem:[#allocation5 + $0x150] sm:$0xf]
    %v204 = vld [vmem:[#allocation5 + $0x154] sm:$0xf]
    %v205 = vld [vmem:[#allocation5 + $0x158] sm:$0xf]
    %v206 = vld [vmem:[#allocation5 + $0x15c] sm:$0xf]
    %v207 = vld [vmem:[#allocation5 + $0x160] sm:$0xf]
    %v208 = vld [vmem:[#allocation5 + $0x164] sm:$0xf]
    %v209 = vld [vmem:[#allocation5 + $0x168] sm:$0xf]
    %v210 = vld [vmem:[#allocation5 + $0x16c] sm:$0xf]
    %v211 = vld [vmem:[#allocation5 + $0x170] sm:$0xf]
    %v212 = vld [vmem:[#allocation5 + $0x174] sm:$0xf]
    %v213 = vld [vmem:[#allocation5 + $0x178] sm:$0xf]
    %v214 = vld [vmem:[#allocation5 + $0x17c] sm:$0xf]
    %v215 = vld [vmem:[#allocation5 + $0x180] sm:$0xf]
    %v216 = vld [vmem:[#allocation5 + $0x184] sm:$0xf]
    %v217 = vld [vmem:[#allocation5 + $0x188] sm:$0xf]
    %v218 = vld [vmem:[#allocation5 + $0x18c] sm:$0xf]
    %v219 = vld [vmem:[#allocation5 + $0x190] sm:$0xf]
    %v220 = vld [vmem:[#allocation5 + $0x194] sm:$0xf]
    %v221 = vld [vmem:[#allocation5 + $0x198] sm:$0xf]
    %v222 = vld [vmem:[#allocation5 + $0x19c] sm:$0xf]
    %v223 = vld [vmem:[#allocation5 + $0x1a0] sm:$0xf]
    %v224 = vld [vmem:[#allocation5 + $0x1a4] sm:$0xf]
    %v225 = vld [vmem:[#allocation5 + $0x1a8] sm:$0xf]
    %v226 = vld [vmem:[#allocation5 + $0x1ac] sm:$0xf]
    %v227 = vld [vmem:[#allocation5 + $0x1b0] sm:$0xf]
    %v228 = vld [vmem:[#allocation5 + $0x1b4] sm:$0xf]
    %v229 = vld [vmem:[#allocation5 + $0x1b8] sm:$0xf]
    %v230 = vld [vmem:[#allocation5 + $0x1bc] sm:$0xf]
    %v231 = vld [vmem:[#allocation5 + $0x1c0] sm:$0xf]
    %v232 = vld [vmem:[#allocation5 + $0x1c4] sm:$0xf]
    %v233 = vld [vmem:[#allocation5 + $0x1c8] sm:$0xf]
    %v234 = vld [vmem:[#allocation5 + $0x1cc] sm:$0xf]
    %v235 = vld [vmem:[#allocation5 + $0x1d0] sm:$0xf]
    %v236 = vld [vmem:[#allocation5 + $0x1d4] sm:$0xf]
    %v237 = vld [vmem:[#allocation5 + $0x1d8] sm:$0xf]
    %v238 = vld [vmem:[#allocation5 + $0x1dc] sm:$0xf]
    %v239 = vld [vmem:[#allocation5 + $0x1e0] sm:$0xf]
    %v240 = vld [vmem:[#allocation5 + $0x1e4] sm:$0xf]
    %v241 = vld [vmem:[#allocation5 + $0x1e8] sm:$0xf]
    %v242 = vld [vmem:[#allocation5 + $0x1ec] sm:$0xf]
    %v243 = vld [vmem:[#allocation5 + $0x1f0] sm:$0xf]
    %v244 = vld [vmem:[#allocation5 + $0x1f4] sm:$0xf]
    %v245 = vld [vmem:[#allocation5 + $0x1f8] sm:$0xf]
    %v246 = vld [vmem:[#allocation5 + $0x1fc] sm:$0xf]
    %v247 = vld [vmem:[%s2] sm:$0x1]
    %v249 = vlaneseq
    %v250 = vshrl.u32 %v249, 7
    %v251 = vsub.s32 0, %v250
    %v252 = vrot.slane %v247, %v251
    %v382 = vunpack.c.l.b16 %v119
    %v383 = vunpack.c.l.b16 %v120
    %v384 = vunpack.c.l.b16 %v121
    %v385 = vunpack.c.l.b16 %v122
    %v386 = vunpack.c.l.b16 %v123
    %v387 = vunpack.c.l.b16 %v124
    %v388 = vunpack.c.l.b16 %v125
    %v389 = vunpack.c.l.b16 %v126
    %v390 = vunpack.c.l.b16 %v127
    %v391 = vunpack.c.l.b16 %v128
    %v392 = vunpack.c.l.b16 %v129
    %v393 = vunpack.c.l.b16 %v130
    %v394 = vunpack.c.l.b16 %v131
    %v395 = vunpack.c.l.b16 %v132
    %v396 = vunpack.c.l.b16 %v133
    %v397 = vunpack.c.l.b16 %v134
    %v398 = vunpack.c.l.b16 %v135
    %v399 = vunpack.c.l.b16 %v136
    %v400 = vunpack.c.l.b16 %v137
    %v401 = vunpack.c.l.b16 %v138
    %v402 = vunpack.c.l.b16 %v139
    %v403 = vunpack.c.l.b16 %v140
    %v404 = vunpack.c.l.b16 %v141
    %v405 = vunpack.c.l.b16 %v142
    %v406 = vunpack.c.l.b16 %v143
    %v407 = vunpack.c.l.b16 %v144
    %v408 = vunpack.c.l.b16 %v145
    %v409 = vunpack.c.l.b16 %v146
    %v410 = vunpack.c.l.b16 %v147
    %v411 = vunpack.c.l.b16 %v148
    %v412 = vunpack.c.l.b16 %v149
    %v413 = vunpack.c.l.b16 %v150
    %v414 = vunpack.c.l.b16 %v151
    %v415 = vunpack.c.l.b16 %v152
    %v416 = vunpack.c.l.b16 %v153
    %v417 = vunpack.c.l.b16 %v154
    %v418 = vunpack.c.l.b16 %v155
    %v419 = vunpack.c.l.b16 %v156
    %v420 = vunpack.c.l.b16 %v157
    %v421 = vunpack.c.l.b16 %v158
    %v422 = vunpack.c.l.b16 %v159
    %v423 = vunpack.c.l.b16 %v160
    %v424 = vunpack.c.l.b16 %v161
    %v425 = vunpack.c.l.b16 %v162
    %v426 = vunpack.c.l.b16 %v163
    %v427 = vunpack.c.l.b16 %v164
    %v428 = vunpack.c.l.b16 %v165
    %v429 = vunpack.c.l.b16 %v166
    %v430 = vunpack.c.l.b16 %v167
    %v431 = vunpack.c.l.b16 %v168
    %v432 = vunpack.c.l.b16 %v169
    %v433 = vunpack.c.l.b16 %v170
    %v434 = vunpack.c.l.b16 %v171
    %v435 = vunpack.c.l.b16 %v172
    %v436 = vunpack.c.l.b16 %v173
    %v437 = vunpack.c.l.b16 %v174
    %v438 = vunpack.c.l.b16 %v175
    %v439 = vunpack.c.l.b16 %v176
    %v440 = vunpack.c.l.b16 %v177
    %v441 = vunpack.c.l.b16 %v178
    %v442 = vunpack.c.l.b16 %v179
    %v443 = vunpack.c.l.b16 %v180
    %v444 = vunpack.c.l.b16 %v181
    %v445 = vunpack.c.l.b16 %v182
    %v446 = vunpack.c.l.b16 %v183
    %v447 = vunpack.c.l.b16 %v184
    %v448 = vunpack.c.l.b16 %v185
    %v449 = vunpack.c.l.b16 %v186
    %v450 = vunpack.c.l.b16 %v187
    %v451 = vunpack.c.l.b16 %v188
    %v452 = vunpack.c.l.b16 %v189
    %v453 = vunpack.c.l.b16 %v190
    %v454 = vunpack.c.l.b16 %v191
    %v455 = vunpack.c.l.b16 %v192
    %v456 = vunpack.c.l.b16 %v193
    %v457 = vunpack.c.l.b16 %v194
    %v458 = vunpack.c.l.b16 %v195
    %v459 = vunpack.c.l.b16 %v196
    %v460 = vunpack.c.l.b16 %v197
    %v461 = vunpack.c.l.b16 %v198
    %v462 = vunpack.c.l.b16 %v199
    %v463 = vunpack.c.l.b16 %v200
    %v464 = vunpack.c.l.b16 %v201
    %v465 = vunpack.c.l.b16 %v202
    %v466 = vunpack.c.l.b16 %v203
    %v467 = vunpack.c.l.b16 %v204
    %v468 = vunpack.c.l.b16 %v205
    %v469 = vunpack.c.l.b16 %v206
    %v470 = vunpack.c.l.b16 %v207
    %v471 = vunpack.c.l.b16 %v208
    %v472 = vunpack.c.l.b16 %v209
    %v473 = vunpack.c.l.b16 %v210
    %v474 = vunpack.c.l.b16 %v211
    %v475 = vunpack.c.l.b16 %v212
    %v476 = vunpack.c.l.b16 %v213
    %v477 = vunpack.c.l.b16 %v214
    %v478 = vunpack.c.l.b16 %v215
    %v479 = vunpack.c.l.b16 %v216
    %v480 = vunpack.c.l.b16 %v217
    %v481 = vunpack.c.l.b16 %v218
    %v482 = vunpack.c.l.b16 %v219
    %v483 = vunpack.c.l.b16 %v220
    %v484 = vunpack.c.l.b16 %v221
    %v485 = vunpack.c.l.b16 %v222
    %v486 = vunpack.c.l.b16 %v223
    %v487 = vunpack.c.l.b16 %v224
    %v488 = vunpack.c.l.b16 %v225
    %v489 = vunpack.c.l.b16 %v226
    %v490 = vunpack.c.l.b16 %v227
    %v491 = vunpack.c.l.b16 %v228
    %v492 = vunpack.c.l.b16 %v229
    %v493 = vunpack.c.l.b16 %v230
    %v494 = vunpack.c.l.b16 %v231
    %v495 = vunpack.c.l.b16 %v232
    %v496 = vunpack.c.l.b16 %v233
    %v497 = vunpack.c.l.b16 %v234
    %v498 = vunpack.c.l.b16 %v235
    %v499 = vunpack.c.l.b16 %v236
    %v500 = vunpack.c.l.b16 %v237
    %v501 = vunpack.c.l.b16 %v238
    %v502 = vunpack.c.l.b16 %v239
    %v503 = vunpack.c.l.b16 %v240
    %v504 = vunpack.c.l.b16 %v241
    %v505 = vunpack.c.l.b16 %v242
    %v506 = vunpack.c.l.b16 %v243
    %v507 = vunpack.c.l.b16 %v244
    %v508 = vunpack.c.l.b16 %v245
    %v509 = vunpack.c.l.b16 %v246
    %v510 = vpack.c.b16 %v383, %v382
    %v511 = vpack.c.b16 %v385, %v384
    %v512 = vpack.c.b16 %v387, %v386
    %v513 = vpack.c.b16 %v389, %v388
    %v514 = vpack.c.b16 %v391, %v390
    %v515 = vpack.c.b16 %v393, %v392
    %v516 = vpack.c.b16 %v395, %v394
    %v517 = vpack.c.b16 %v397, %v396
    %v518 = vpack.c.b16 %v399, %v398
    %v519 = vpack.c.b16 %v401, %v400
    %v520 = vpack.c.b16 %v403, %v402
    %v521 = vpack.c.b16 %v405, %v404
    %v522 = vpack.c.b16 %v407, %v406
    %v523 = vpack.c.b16 %v409, %v408
    %v524 = vpack.c.b16 %v411, %v410
    %v525 = vpack.c.b16 %v413, %v412
    %v526 = vpack.c.b16 %v415, %v414
    %v527 = vpack.c.b16 %v417, %v416
    %v528 = vpack.c.b16 %v419, %v418
    %v529 = vpack.c.b16 %v421, %v420
    %v530 = vpack.c.b16 %v423, %v422
    %v531 = vpack.c.b16 %v425, %v424
    %v532 = vpack.c.b16 %v427, %v426
    %v533 = vpack.c.b16 %v429, %v428
    %v534 = vpack.c.b16 %v431, %v430
    %v535 = vpack.c.b16 %v433, %v432
    %v536 = vpack.c.b16 %v435, %v434
    %v537 = vpack.c.b16 %v437, %v436
    %v538 = vpack.c.b16 %v439, %v438
    %v539 = vpack.c.b16 %v441, %v440
    %v540 = vpack.c.b16 %v443, %v442
    %v541 = vpack.c.b16 %v445, %v444
    %v542 = vpack.c.b16 %v447, %v446
    %v543 = vpack.c.b16 %v449, %v448
    %v544 = vpack.c.b16 %v451, %v450
    %v545 = vpack.c.b16 %v453, %v452
    %v546 = vpack.c.b16 %v455, %v454
    %v547 = vpack.c.b16 %v457, %v456
    %v548 = vpack.c.b16 %v459, %v458
    %v549 = vpack.c.b16 %v461, %v460
    %v550 = vpack.c.b16 %v463, %v462
    %v551 = vpack.c.b16 %v465, %v464
    %v552 = vpack.c.b16 %v467, %v466
    %v553 = vpack.c.b16 %v469, %v468
    %v554 = vpack.c.b16 %v471, %v470
    %v555 = vpack.c.b16 %v473, %v472
    %v556 = vpack.c.b16 %v475, %v474
    %v557 = vpack.c.b16 %v477, %v476
    %v558 = vpack.c.b16 %v479, %v478
    %v559 = vpack.c.b16 %v481, %v480
    %v560 = vpack.c.b16 %v483, %v482
    %v561 = vpack.c.b16 %v485, %v484
    %v562 = vpack.c.b16 %v487, %v486
    %v563 = vpack.c.b16 %v489, %v488
    %v564 = vpack.c.b16 %v491, %v490
    %v565 = vpack.c.b16 %v493, %v492
    %v566 = vpack.c.b16 %v495, %v494
    %v567 = vpack.c.b16 %v497, %v496
    %v568 = vpack.c.b16 %v499, %v498
    %v569 = vpack.c.b16 %v501, %v500
    %v570 = vpack.c.b16 %v503, %v502
    %v571 = vpack.c.b16 %v505, %v504
    %v572 = vpack.c.b16 %v507, %v506
    %v573 = vpack.c.b16 %v509, %v508
    %638 = vmatprep.subr.bf16.mxu0 0
    %639 = vmatpush1.bf16.msra.mxu0 %v510
    %640 = vmatprep.subr.bf16.mxu0 0
    %641 = vmatpush1.bf16.msra.mxu0 %v511
    %642 = vmatprep.subr.bf16.mxu0 0
    %643 = vmatpush1.bf16.msra.mxu0 %v512
    %644 = vmatprep.subr.bf16.mxu0 0
    %645 = vmatpush1.bf16.msra.mxu0 %v513
    %646 = vmatprep.subr.bf16.mxu0 0
    %647 = vmatpush1.bf16.msra.mxu0 %v514
    %648 = vmatprep.subr.bf16.mxu0 0
    %649 = vmatpush1.bf16.msra.mxu0 %v515
    %650 = vmatprep.subr.bf16.mxu0 0
    %651 = vmatpush1.bf16.msra.mxu0 %v516
    %652 = vmatprep.subr.bf16.mxu0 0
    %653 = vmatpush1.bf16.msra.mxu0 %v517
    %654 = vmatprep.subr.bf16.mxu0 0
    %655 = vmatpush1.bf16.msra.mxu0 %v518
    %656 = vmatprep.subr.bf16.mxu0 0
    %657 = vmatpush1.bf16.msra.mxu0 %v519
    %658 = vmatprep.subr.bf16.mxu0 0
    %659 = vmatpush1.bf16.msra.mxu0 %v520
    %660 = vmatprep.subr.bf16.mxu0 0
    %661 = vmatpush1.bf16.msra.mxu0 %v521
    %662 = vmatprep.subr.bf16.mxu0 0
    %663 = vmatpush1.bf16.msra.mxu0 %v522
    %664 = vmatprep.subr.bf16.mxu0 0
    %665 = vmatpush1.bf16.msra.mxu0 %v523
    %666 = vmatprep.subr.bf16.mxu0 0
    %667 = vmatpush1.bf16.msra.mxu0 %v524
    %668 = vmatprep.subr.bf16.mxu0 0
    %669 = vmatpush1.bf16.msra.mxu0 %v525
    %670 = vmatprep.mubr.bf16.mxu0 %v112
    %671 = vmatmul.mubr.bf16.gmra.mrb[0].mxu0 %v111
    %v672 = vpop.f32.mrb[0].mxu0
    %v673 = vadd.f32 %v252, %v672
    %v674 = vpop.f32.mrb[0].mxu0
    %v675 = vpop.f32.mrb[0].mxu0
    %v676 = vpop.f32.mrb[0].mxu0
    %677 = vdwg.mxu0
    %678 = vmatprep.subr.bf16.mxu0 0
    %679 = vmatpush1.bf16.msra.mxu0 %v526
    %680 = vmatprep.subr.bf16.mxu0 0
    %681 = vmatpush1.bf16.msra.mxu0 %v527
    %682 = vmatprep.subr.bf16.mxu0 0
    %683 = vmatpush1.bf16.msra.mxu0 %v528
    %684 = vmatprep.subr.bf16.mxu0 0
    %685 = vmatpush1.bf16.msra.mxu0 %v529
    %686 = vmatprep.subr.bf16.mxu0 0
    %687 = vmatpush1.bf16.msra.mxu0 %v530
    %688 = vmatprep.subr.bf16.mxu0 0
    %689 = vmatpush1.bf16.msra.mxu0 %v531
    %690 = vmatprep.subr.bf16.mxu0 0
    %691 = vmatpush1.bf16.msra.mxu0 %v532
    %692 = vmatprep.subr.bf16.mxu0 0
    %693 = vmatpush1.bf16.msra.mxu0 %v533
    %694 = vmatprep.subr.bf16.mxu0 0
    %695 = vmatpush1.bf16.msra.mxu0 %v534
    %696 = vmatprep.subr.bf16.mxu0 0
    %697 = vmatpush1.bf16.msra.mxu0 %v535
    %698 = vmatprep.subr.bf16.mxu0 0
    %699 = vmatpush1.bf16.msra.mxu0 %v536
    %700 = vmatprep.subr.bf16.mxu0 0
    %701 = vmatpush1.bf16.msra.mxu0 %v537
    %702 = vmatprep.subr.bf16.mxu0 0
    %703 = vmatpush1.bf16.msra.mxu0 %v538
    %704 = vmatprep.subr.bf16.mxu0 0
    %705 = vmatpush1.bf16.msra.mxu0 %v539
    %706 = vmatprep.subr.bf16.mxu0 0
    %707 = vmatpush1.bf16.msra.mxu0 %v540
    %708 = vmatprep.subr.bf16.mxu0 0
    %709 = vmatpush1.bf16.msra.mxu0 %v541
    %710 = vmatprep.mubr.bf16.mxu0 %v114
    %711 = vmatmul.mubr.bf16.gmra.mrb[0].mxu0 %v113
    %v712 = vpop.f32.mrb[0].mxu0
    %v713 = vadd.f32 %v673, %v712
    %v714 = vpop.f32.mrb[0].mxu0
    %v715 = vpop.f32.mrb[0].mxu0
    %v716 = vpop.f32.mrb[0].mxu0
    %717 = vdwg.mxu0
    %718 = vmatprep.subr.bf16.mxu0 0
    %719 = vmatpush1.bf16.msra.mxu0 %v542
    %720 = vmatprep.subr.bf16.mxu0 0
    %721 = vmatpush1.bf16.msra.mxu0 %v543
    %722 = vmatprep.subr.bf16.mxu0 0
    %723 = vmatpush1.bf16.msra.mxu0 %v544
    %724 = vmatprep.subr.bf16.mxu0 0
    %725 = vmatpush1.bf16.msra.mxu0 %v545
    %726 = vmatprep.subr.bf16.mxu0 0
    %727 = vmatpush1.bf16.msra.mxu0 %v546
    %728 = vmatprep.subr.bf16.mxu0 0
    %729 = vmatpush1.bf16.msra.mxu0 %v547
    %730 = vmatprep.subr.bf16.mxu0 0
    %731 = vmatpush1.bf16.msra.mxu0 %v548
    %732 = vmatprep.subr.bf16.mxu0 0
    %733 = vmatpush1.bf16.msra.mxu0 %v549
    %734 = vmatprep.subr.bf16.mxu0 0
    %735 = vmatpush1.bf16.msra.mxu0 %v550
    %736 = vmatprep.subr.bf16.mxu0 0
    %737 = vmatpush1.bf16.msra.mxu0 %v551
    %738 = vmatprep.subr.bf16.mxu0 0
    %739 = vmatpush1.bf16.msra.mxu0 %v552
    %740 = vmatprep.subr.bf16.mxu0 0
    %741 = vmatpush1.bf16.msra.mxu0 %v553
    %742 = vmatprep.subr.bf16.mxu0 0
    %743 = vmatpush1.bf16.msra.mxu0 %v554
    %744 = vmatprep.subr.bf16.mxu0 0
    %745 = vmatpush1.bf16.msra.mxu0 %v555
    %746 = vmatprep.subr.bf16.mxu0 0
    %747 = vmatpush1.bf16.msra.mxu0 %v556
    %748 = vmatprep.subr.bf16.mxu0 0
    %749 = vmatpush1.bf16.msra.mxu0 %v557
    %750 = vmatprep.mubr.bf16.mxu0 %v116
    %751 = vmatmul.mubr.bf16.gmra.mrb[0].mxu0 %v115
    %v752 = vpop.f32.mrb[0].mxu0
    %v753 = vadd.f32 %v713, %v752
    %v754 = vpop.f32.mrb[0].mxu0
    %v755 = vpop.f32.mrb[0].mxu0
    %v756 = vpop.f32.mrb[0].mxu0
    %757 = vdwg.mxu0
    %758 = vmatprep.subr.bf16.mxu0 0
    %759 = vmatpush1.bf16.msra.mxu0 %v558
    %760 = vmatprep.subr.bf16.mxu0 0
    %761 = vmatpush1.bf16.msra.mxu0 %v559
    %762 = vmatprep.subr.bf16.mxu0 0
    %763 = vmatpush1.bf16.msra.mxu0 %v560
    %764 = vmatprep.subr.bf16.mxu0 0
    %765 = vmatpush1.bf16.msra.mxu0 %v561
    %766 = vmatprep.subr.bf16.mxu0 0
    %767 = vmatpush1.bf16.msra.mxu0 %v562
    %768 = vmatprep.subr.bf16.mxu0 0
    %769 = vmatpush1.bf16.msra.mxu0 %v563
    %770 = vmatprep.subr.bf16.mxu0 0
    %771 = vmatpush1.bf16.msra.mxu0 %v564
    %772 = vmatprep.subr.bf16.mxu0 0
    %773 = vmatpush1.bf16.msra.mxu0 %v565
    %774 = vmatprep.subr.bf16.mxu0 0
    %775 = vmatpush1.bf16.msra.mxu0 %v566
    %776 = vmatprep.subr.bf16.mxu0 0
    %777 = vmatpush1.bf16.msra.mxu0 %v567
    %778 = vmatprep.subr.bf16.mxu0 0
    %779 = vmatpush1.bf16.msra.mxu0 %v568
    %780 = vmatprep.subr.bf16.mxu0 0
    %781 = vmatpush1.bf16.msra.mxu0 %v569
    %782 = vmatprep.subr.bf16.mxu0 0
    %783 = vmatpush1.bf16.msra.mxu0 %v570
    %784 = vmatprep.subr.bf16.mxu0 0
    %785 = vmatpush1.bf16.msra.mxu0 %v571
    %786 = vmatprep.subr.bf16.mxu0 0
    %787 = vmatpush1.bf16.msra.mxu0 %v572
    %788 = vmatprep.subr.bf16.mxu0 0
    %789 = vmatpush1.bf16.msra.mxu0 %v573
    %790 = vmatprep.mubr.bf16.mxu0 %v118
    %791 = vmatmul.mubr.bf16.gmra.mrb[0].mxu0 %v117
    %v792 = vpop.f32.mrb[0].mxu0
    %v793 = vadd.f32 %v753, %v792
    %v794 = vpop.f32.mrb[0].mxu0
    %v795 = vpop.f32.mrb[0].mxu0
    %v796 = vpop.f32.mrb[0].mxu0
    %797 = vdwg.mxu0
    %v798 = vmax.f32 %v793, 0.0
    %v799 = vpack.c.bf16 %v798, %v798
    %v800 = vld [vmem:[#allocation7] sm:$0xf]
    %v801 = vld [vmem:[#allocation7 + $0x4] sm:$0xf]
    %v802 = vld [vmem:[#allocation7 + $0x8] sm:$0xf]
    %v803 = vld [vmem:[#allocation7 + $0xc] sm:$0xf]
    %v804 = vld [vmem:[#allocation7 + $0x10] sm:$0xf]
    %v805 = vld [vmem:[#allocation7 + $0x14] sm:$0xf]
    %v806 = vld [vmem:[#allocation7 + $0x18] sm:$0xf]
    %v807 = vld [vmem:[#allocation7 + $0x1c] sm:$0xf]
    %v808 = vld [vmem:[#allocation7 + $0x20] sm:$0xf]
    %v809 = vld [vmem:[#allocation7 + $0x24] sm:$0xf]
    %v810 = vld [vmem:[#allocation7 + $0x28] sm:$0xf]
    %v811 = vld [vmem:[#allocation7 + $0x2c] sm:$0xf]
    %v812 = vld [vmem:[#allocation7 + $0x30] sm:$0xf]
    %v813 = vld [vmem:[#allocation7 + $0x34] sm:$0xf]
    %v814 = vld [vmem:[#allocation7 + $0x38] sm:$0xf]
    %v815 = vld [vmem:[#allocation7 + $0x3c] sm:$0xf]
    %v816 = vld [vmem:[%s4] sm:$0x1]
    %v818 = vlaneseq
    %v819 = vshrl.u32 %v818, 7
    %v820 = vsub.s32 0, %v819
    %v821 = vrot.slane %v816, %v820
    %v839 = vunpack.c.l.b16 %v800
    %v840 = vunpack.c.l.b16 %v801
    %v841 = vunpack.c.l.b16 %v802
    %v842 = vunpack.c.l.b16 %v803
    %v843 = vunpack.c.l.b16 %v804
    %v844 = vunpack.c.l.b16 %v805
    %v845 = vunpack.c.l.b16 %v806
    %v846 = vunpack.c.l.b16 %v807
    %v847 = vunpack.c.l.b16 %v808
    %v848 = vunpack.c.l.b16 %v809
    %v849 = vunpack.c.l.b16 %v810
    %v850 = vunpack.c.l.b16 %v811
    %v851 = vunpack.c.l.b16 %v812
    %v852 = vunpack.c.l.b16 %v813
    %v853 = vunpack.c.l.b16 %v814
    %v854 = vunpack.c.l.b16 %v815
    %v855 = vpack.c.b16 %v840, %v839
    %v856 = vpack.c.b16 %v842, %v841
    %v857 = vpack.c.b16 %v844, %v843
    %v858 = vpack.c.b16 %v846, %v845
    %v859 = vpack.c.b16 %v848, %v847
    %v860 = vpack.c.b16 %v850, %v849
    %v861 = vpack.c.b16 %v852, %v851
    %v862 = vpack.c.b16 %v854, %v853
    %871 = vmatprep.subr.bf16.mxu0 0
    %872 = vmatpush1.bf16.msra.mxu0 %v855
    %873 = vmatprep.subr.bf16.mxu0 0
    %874 = vmatpush1.bf16.msra.mxu0 %v856
    %875 = vmatprep.subr.bf16.mxu0 0
    %876 = vmatpush1.bf16.msra.mxu0 %v857
    %877 = vmatprep.subr.bf16.mxu0 0
    %878 = vmatpush1.bf16.msra.mxu0 %v858
    %879 = vmatprep.subr.bf16.mxu0 0
    %880 = vmatpush1.bf16.msra.mxu0 %v859
    %881 = vmatprep.subr.bf16.mxu0 0
    %882 = vmatpush1.bf16.msra.mxu0 %v860
    %883 = vmatprep.subr.bf16.mxu0 0
    %884 = vmatpush1.bf16.msra.mxu0 %v861
    %885 = vmatprep.subr.bf16.mxu0 0
    %886 = vmatpush1.bf16.msra.mxu0 %v862
    %887 = vmatprep.subr.bf16.mxu0 0
    %888 = vmatpush1.bf16.msra.mxu0 0
    %889 = vmatprep.subr.bf16.mxu0 0
    %890 = vmatpush1.bf16.msra.mxu0 0
    %891 = vmatprep.subr.bf16.mxu0 0
    %892 = vmatpush1.bf16.msra.mxu0 0
    %893 = vmatprep.subr.bf16.mxu0 0
    %894 = vmatpush1.bf16.msra.mxu0 0
    %895 = vmatprep.subr.bf16.mxu0 0
    %896 = vmatpush1.bf16.msra.mxu0 0
    %897 = vmatprep.subr.bf16.mxu0 0
    %898 = vmatpush1.bf16.msra.mxu0 0
    %899 = vmatprep.subr.bf16.mxu0 0
    %900 = vmatpush1.bf16.msra.mxu0 0
    %901 = vmatprep.subr.bf16.mxu0 0
    %902 = vmatpush1.bf16.msra.mxu0 0
    %903 = vmatprep.mubr.bf16.mxu0 0
    %904 = vmatmul.mubr.bf16.gmra.mrb[0].mxu0 %v799
    %v905 = vpop.f32.mrb[0].mxu0
    %v906 = vadd.f32 %v821, %v905
    %v907 = vpop.f32.mrb[0].mxu0
    %v908 = vpop.f32.mrb[0].mxu0
    %v909 = vpop.f32.mrb[0].mxu0
    %910 = vdwg.mxu0
    %911 = vst [vmem:[#allocation11] sm:$0xff] %v906
    %v912 = vpack.c.bf16 %v906, %v906
    %v913 = vld [vmem:[#allocation8] sm:$0xf]
    %v914 = vld [vmem:[#allocation8 + $0x4] sm:$0xf]
    %v915 = vld [vmem:[#allocation8 + $0x8] sm:$0xf]
    %v916 = vld [vmem:[#allocation8 + $0xc] sm:$0xf]
    %v917 = vld [vmem:[#allocation8 + $0x10] sm:$0xf]
    %v918 = vld [vmem:[#allocation8 + $0x14] sm:$0xf]
    %v919 = vld [vmem:[#allocation8 + $0x18] sm:$0xf]
    %v920 = vld [vmem:[#allocation8 + $0x1c] sm:$0xf]
    %v921 = vld [vmem:[#allocation8 + $0x20] sm:$0xf]
    %v922 = vld [vmem:[#allocation8 + $0x24] sm:$0xf]
    %v923 = vld [vmem:[#allocation8 + $0x28] sm:$0xf]
    %v924 = vld [vmem:[#allocation8 + $0x2c] sm:$0xf]
    %v925 = vld [vmem:[#allocation8 + $0x30] sm:$0xf]
    %v926 = vld [vmem:[#allocation8 + $0x34] sm:$0xf]
    %v927 = vld [vmem:[#allocation8 + $0x38] sm:$0xf]
    %v928 = vld [vmem:[#allocation8 + $0x3c] sm:$0xf]
    %v929 = vld [vmem:[%s6] sm:$0x1]
    %v931 = vlaneseq
    %v932 = vshrl.u32 %v931, 7
    %v933 = vsub.s32 0, %v932
    %v934 = vrot.slane %v929, %v933
    %v952 = vunpack.c.l.b16 %v913
    %v953 = vunpack.c.l.b16 %v914
    %v954 = vunpack.c.l.b16 %v915
    %v955 = vunpack.c.l.b16 %v916
    %v956 = vunpack.c.l.b16 %v917
    %v957 = vunpack.c.l.b16 %v918
    %v958 = vunpack.c.l.b16 %v919
    %v959 = vunpack.c.l.b16 %v920
    %v960 = vunpack.c.l.b16 %v921
    %v961 = vunpack.c.l.b16 %v922
    %v962 = vunpack.c.l.b16 %v923
    %v963 = vunpack.c.l.b16 %v924
    %v964 = vunpack.c.l.b16 %v925
    %v965 = vunpack.c.l.b16 %v926
    %v966 = vunpack.c.l.b16 %v927
    %v967 = vunpack.c.l.b16 %v928
    %v968 = vpack.c.b16 %v953, %v952
    %v969 = vpack.c.b16 %v955, %v954
    %v970 = vpack.c.b16 %v957, %v956
    %v971 = vpack.c.b16 %v959, %v958
    %v972 = vpack.c.b16 %v961, %v960
    %v973 = vpack.c.b16 %v963, %v962
    %v974 = vpack.c.b16 %v965, %v964
    %v975 = vpack.c.b16 %v967, %v966
    %984 = vmatprep.subr.bf16.mxu0 0
    %985 = vmatpush1.bf16.msra.mxu0 %v968
    %986 = vmatprep.subr.bf16.mxu0 0
    %987 = vmatpush1.bf16.msra.mxu0 %v969
    %988 = vmatprep.subr.bf16.mxu0 0
    %989 = vmatpush1.bf16.msra.mxu0 %v970
    %990 = vmatprep.subr.bf16.mxu0 0
    %991 = vmatpush1.bf16.msra.mxu0 %v971
    %992 = vmatprep.subr.bf16.mxu0 0
    %993 = vmatpush1.bf16.msra.mxu0 %v972
    %994 = vmatprep.subr.bf16.mxu0 0
    %995 = vmatpush1.bf16.msra.mxu0 %v973
    %996 = vmatprep.subr.bf16.mxu0 0
    %997 = vmatpush1.bf16.msra.mxu0 %v974
    %998 = vmatprep.subr.bf16.mxu0 0
    %999 = vmatpush1.bf16.msra.mxu0 %v975
    %1000 = vmatprep.subr.bf16.mxu0 0
    %1001 = vmatpush1.bf16.msra.mxu0 0
    %1002 = vmatprep.subr.bf16.mxu0 0
    %1003 = vmatpush1.bf16.msra.mxu0 0
    %1004 = vmatprep.subr.bf16.mxu0 0
    %1005 = vmatpush1.bf16.msra.mxu0 0
    %1006 = vmatprep.subr.bf16.mxu0 0
    %1007 = vmatpush1.bf16.msra.mxu0 0
    %1008 = vmatprep.subr.bf16.mxu0 0
    %1009 = vmatpush1.bf16.msra.mxu0 0
    %1010 = vmatprep.subr.bf16.mxu0 0
    %1011 = vmatpush1.bf16.msra.mxu0 0
    %1012 = vmatprep.subr.bf16.mxu0 0
    %1013 = vmatpush1.bf16.msra.mxu0 0
    %1014 = vmatprep.subr.bf16.mxu0 0
    %1015 = vmatpush1.bf16.msra.mxu0 0
    %1016 = vmatprep.mubr.bf16.mxu0 0
    %1017 = vmatmul.mubr.bf16.gmra.mrb[0].mxu0 %v912
    %v1018 = vpop.f32.mrb[0].mxu0
    %v1019 = vadd.f32 %v934, %v1018
    %v1020 = vpop.f32.mrb[0].mxu0
    %v1021 = vpop.f32.mrb[0].mxu0
    %v1022 = vpop.f32.mrb[0].mxu0
    %1023 = vdwg.mxu0
    %v1024 = vmax.f32 %v1019, 0.0
    %v1025 = vpack.c.bf16 %v1024, %v1024
    %v1026 = vld [vmem:[#allocation10] sm:$0xff]
    %v1027 = vld [vmem:[#allocation10 + $0x8] sm:$0xff]
    %v1028 = vld [vmem:[#allocation10 + $0x10] sm:$0xff]
    %v1029 = vld [vmem:[#allocation10 + $0x18] sm:$0xff]
    %v1030 = vld [vmem:[#allocation10 + $0x20] sm:$0xff]
    %v1031 = vld [vmem:[#allocation10 + $0x28] sm:$0xff]
    %v1032 = vld [vmem:[#allocation10 + $0x30] sm:$0xff]
    %v1033 = vld [vmem:[#allocation10 + $0x38] sm:$0xff]
    %v1034 = vld [vmem:[#allocation10 + $0x40] sm:$0xff]
    %v1035 = vld [vmem:[#allocation10 + $0x48] sm:$0xff]
    %v1036 = vld [vmem:[#allocation10 + $0x50] sm:$0xff]
    %v1037 = vld [vmem:[#allocation10 + $0x58] sm:$0xff]
    %v1038 = vld [vmem:[#allocation10 + $0x60] sm:$0xff]
    %v1039 = vld [vmem:[#allocation10 + $0x68] sm:$0xff]
    %v1040 = vld [vmem:[#allocation10 + $0x70] sm:$0xff]
    %v1041 = vld [vmem:[#allocation10 + $0x78] sm:$0xff]
    %v1042 = vld [vmem:[#allocation10 + $0x80] sm:$0xff]
    %v1043 = vld [vmem:[#allocation10 + $0x88] sm:$0xff]
    %v1044 = vld [vmem:[#allocation10 + $0x90] sm:$0xff]
    %v1045 = vld [vmem:[#allocation10 + $0x98] sm:$0xff]
    %v1046 = vld [vmem:[#allocation10 + $0xa0] sm:$0xff]
    %v1047 = vld [vmem:[#allocation10 + $0xa8] sm:$0xff]
    %v1048 = vld [vmem:[#allocation10 + $0xb0] sm:$0xff]
    %v1049 = vld [vmem:[#allocation10 + $0xb8] sm:$0xff]
    %v1050 = vld [vmem:[#allocation10 + $0xc0] sm:$0xff]
    %v1051 = vld [vmem:[#allocation10 + $0xc8] sm:$0xff]
    %v1052 = vld [vmem:[#allocation10 + $0xd0] sm:$0xff]
    %v1053 = vld [vmem:[#allocation10 + $0xd8] sm:$0xff]
    %v1054 = vld [vmem:[#allocation10 + $0xe0] sm:$0xff]
    %v1055 = vld [vmem:[#allocation10 + $0xe8] sm:$0xff]
    %v1056 = vld [vmem:[#allocation10 + $0xf0] sm:$0xff]
    %v1057 = vld [vmem:[#allocation10 + $0xf8] sm:$0xff]
    %v1058 = vld [vmem:[#allocation10 + $0x100] sm:$0xff]
    %v1059 = vld [vmem:[#allocation10 + $0x108] sm:$0xff]
    %v1060 = vld [vmem:[#allocation10 + $0x110] sm:$0xff]
    %v1061 = vld [vmem:[#allocation10 + $0x118] sm:$0xff]
    %v1062 = vld [vmem:[#allocation10 + $0x120] sm:$0xff]
    %v1063 = vld [vmem:[#allocation10 + $0x128] sm:$0xff]
    %v1064 = vld [vmem:[#allocation10 + $0x130] sm:$0xff]
    %v1065 = vld [vmem:[#allocation10 + $0x138] sm:$0xff]
    %v1066 = vld [vmem:[#allocation10 + $0x140] sm:$0xff]
    %v1067 = vld [vmem:[#allocation10 + $0x148] sm:$0xff]
    %v1068 = vld [vmem:[#allocation10 + $0x150] sm:$0xff]
    %v1069 = vld [vmem:[#allocation10 + $0x158] sm:$0xff]
    %v1070 = vld [vmem:[#allocation10 + $0x160] sm:$0xff]
    %v1071 = vld [vmem:[#allocation10 + $0x168] sm:$0xff]
    %v1072 = vld [vmem:[#allocation10 + $0x170] sm:$0xff]
    %v1073 = vld [vmem:[#allocation10 + $0x178] sm:$0xff]
    %v1074 = vld [vmem:[#allocation10 + $0x180] sm:$0xff]
    %v1075 = vld [vmem:[#allocation10 + $0x188] sm:$0xff]
    %v1076 = vld [vmem:[#allocation10 + $0x190] sm:$0xff]
    %v1077 = vld [vmem:[#allocation10 + $0x198] sm:$0xff]
    %v1078 = vld [vmem:[#allocation10 + $0x1a0] sm:$0xff]
    %v1079 = vld [vmem:[#allocation10 + $0x1a8] sm:$0xff]
    %v1080 = vld [vmem:[#allocation10 + $0x1b0] sm:$0xff]
    %v1081 = vld [vmem:[#allocation10 + $0x1b8] sm:$0xff]
    %v1082 = vld [vmem:[#allocation10 + $0x1c0] sm:$0xff]
    %v1083 = vld [vmem:[#allocation10 + $0x1c8] sm:$0xff]
    %v1084 = vld [vmem:[#allocation10 + $0x1d0] sm:$0xff]
    %v1085 = vld [vmem:[#allocation10 + $0x1d8] sm:$0xff]
    %v1086 = vld [vmem:[#allocation10 + $0x1e0] sm:$0xff]
    %v1087 = vld [vmem:[#allocation10 + $0x1e8] sm:$0xff]
    %v1088 = vld [vmem:[#allocation10 + $0x1f0] sm:$0xff]
    %v1089 = vld [vmem:[#allocation10 + $0x1f8] sm:$0xff]
    %v1090 = vld [vmem:[%s8] sm:$0xff]
    %v1092 = vlaneseq
    %v1093 = vshrl.u32 %v1092, 7
    %v1094 = vsub.s32 0, %v1093
    %v1095 = vrot.slane %v1090, %v1094
    %v1096 = vlaneseq
    %v1097 = vshrl.u32 %v1096, 7
    %v1098 = vsub.s32 1, %v1097
    %v1099 = vrot.slane %v1090, %v1098
    %v1100 = vlaneseq
    %v1101 = vshrl.u32 %v1100, 7
    %v1102 = vsub.s32 2, %v1101
    %v1103 = vrot.slane %v1090, %v1102
    %v1104 = vlaneseq
    %v1105 = vshrl.u32 %v1104, 7
    %v1106 = vsub.s32 3, %v1105
    %v1107 = vrot.slane %v1090, %v1106
    %v1108 = vlaneseq
    %v1109 = vshrl.u32 %v1108, 7
    %v1110 = vsub.s32 4, %v1109
    %v1111 = vrot.slane %v1090, %v1110
    %v1112 = vlaneseq
    %v1113 = vshrl.u32 %v1112, 7
    %v1114 = vsub.s32 5, %v1113
    %v1115 = vrot.slane %v1090, %v1114
    %v1116 = vlaneseq
    %v1117 = vshrl.u32 %v1116, 7
    %v1118 = vsub.s32 6, %v1117
    %v1119 = vrot.slane %v1090, %v1118
    %v1120 = vlaneseq
    %v1121 = vshrl.u32 %v1120, 7
    %v1122 = vsub.s32 7, %v1121
    %v1123 = vrot.slane %v1090, %v1122
    %v1196 = vunpack.c.l.b16 %v1026
    %v1197 = vunpack.c.h.b16 %v1026
    %v1198 = vunpack.c.l.b16 %v1027
    %v1199 = vunpack.c.h.b16 %v1027
    %v1200 = vunpack.c.l.b16 %v1028
    %v1201 = vunpack.c.h.b16 %v1028
    %v1202 = vunpack.c.l.b16 %v1029
    %v1203 = vunpack.c.h.b16 %v1029
    %v1204 = vunpack.c.l.b16 %v1030
    %v1205 = vunpack.c.h.b16 %v1030
    %v1206 = vunpack.c.l.b16 %v1031
    %v1207 = vunpack.c.h.b16 %v1031
    %v1208 = vunpack.c.l.b16 %v1032
    %v1209 = vunpack.c.h.b16 %v1032
    %v1210 = vunpack.c.l.b16 %v1033
    %v1211 = vunpack.c.h.b16 %v1033
    %v1212 = vunpack.c.l.b16 %v1034
    %v1213 = vunpack.c.h.b16 %v1034
    %v1214 = vunpack.c.l.b16 %v1035
    %v1215 = vunpack.c.h.b16 %v1035
    %v1216 = vunpack.c.l.b16 %v1036
    %v1217 = vunpack.c.h.b16 %v1036
    %v1218 = vunpack.c.l.b16 %v1037
    %v1219 = vunpack.c.h.b16 %v1037
    %v1220 = vunpack.c.l.b16 %v1038
    %v1221 = vunpack.c.h.b16 %v1038
    %v1222 = vunpack.c.l.b16 %v1039
    %v1223 = vunpack.c.h.b16 %v1039
    %v1224 = vunpack.c.l.b16 %v1040
    %v1225 = vunpack.c.h.b16 %v1040
    %v1226 = vunpack.c.l.b16 %v1041
    %v1227 = vunpack.c.h.b16 %v1041
    %v1228 = vunpack.c.l.b16 %v1042
    %v1229 = vunpack.c.h.b16 %v1042
    %v1230 = vunpack.c.l.b16 %v1043
    %v1231 = vunpack.c.h.b16 %v1043
    %v1232 = vunpack.c.l.b16 %v1044
    %v1233 = vunpack.c.h.b16 %v1044
    %v1234 = vunpack.c.l.b16 %v1045
    %v1235 = vunpack.c.h.b16 %v1045
    %v1236 = vunpack.c.l.b16 %v1046
    %v1237 = vunpack.c.h.b16 %v1046
    %v1238 = vunpack.c.l.b16 %v1047
    %v1239 = vunpack.c.h.b16 %v1047
    %v1240 = vunpack.c.l.b16 %v1048
    %v1241 = vunpack.c.h.b16 %v1048
    %v1242 = vunpack.c.l.b16 %v1049
    %v1243 = vunpack.c.h.b16 %v1049
    %v1244 = vunpack.c.l.b16 %v1050
    %v1245 = vunpack.c.h.b16 %v1050
    %v1246 = vunpack.c.l.b16 %v1051
    %v1247 = vunpack.c.h.b16 %v1051
    %v1248 = vunpack.c.l.b16 %v1052
    %v1249 = vunpack.c.h.b16 %v1052
    %v1250 = vunpack.c.l.b16 %v1053
    %v1251 = vunpack.c.h.b16 %v1053
    %v1252 = vunpack.c.l.b16 %v1054
    %v1253 = vunpack.c.h.b16 %v1054
    %v1254 = vunpack.c.l.b16 %v1055
    %v1255 = vunpack.c.h.b16 %v1055
    %v1256 = vunpack.c.l.b16 %v1056
    %v1257 = vunpack.c.h.b16 %v1056
    %v1258 = vunpack.c.l.b16 %v1057
    %v1259 = vunpack.c.h.b16 %v1057
    %v1260 = vunpack.c.l.b16 %v1058
    %v1261 = vunpack.c.h.b16 %v1058
    %v1262 = vunpack.c.l.b16 %v1059
    %v1263 = vunpack.c.h.b16 %v1059
    %v1264 = vunpack.c.l.b16 %v1060
    %v1265 = vunpack.c.h.b16 %v1060
    %v1266 = vunpack.c.l.b16 %v1061
    %v1267 = vunpack.c.h.b16 %v1061
    %v1268 = vunpack.c.l.b16 %v1062
    %v1269 = vunpack.c.h.b16 %v1062
    %v1270 = vunpack.c.l.b16 %v1063
    %v1271 = vunpack.c.h.b16 %v1063
    %v1272 = vunpack.c.l.b16 %v1064
    %v1273 = vunpack.c.h.b16 %v1064
    %v1274 = vunpack.c.l.b16 %v1065
    %v1275 = vunpack.c.h.b16 %v1065
    %v1276 = vunpack.c.l.b16 %v1066
    %v1277 = vunpack.c.h.b16 %v1066
    %v1278 = vunpack.c.l.b16 %v1067
    %v1279 = vunpack.c.h.b16 %v1067
    %v1280 = vunpack.c.l.b16 %v1068
    %v1281 = vunpack.c.h.b16 %v1068
    %v1282 = vunpack.c.l.b16 %v1069
    %v1283 = vunpack.c.h.b16 %v1069
    %v1284 = vunpack.c.l.b16 %v1070
    %v1285 = vunpack.c.h.b16 %v1070
    %v1286 = vunpack.c.l.b16 %v1071
    %v1287 = vunpack.c.h.b16 %v1071
    %v1288 = vunpack.c.l.b16 %v1072
    %v1289 = vunpack.c.h.b16 %v1072
    %v1290 = vunpack.c.l.b16 %v1073
    %v1291 = vunpack.c.h.b16 %v1073
    %v1292 = vunpack.c.l.b16 %v1074
    %v1293 = vunpack.c.h.b16 %v1074
    %v1294 = vunpack.c.l.b16 %v1075
    %v1295 = vunpack.c.h.b16 %v1075
    %v1296 = vunpack.c.l.b16 %v1076
    %v1297 = vunpack.c.h.b16 %v1076
    %v1298 = vunpack.c.l.b16 %v1077
    %v1299 = vunpack.c.h.b16 %v1077
    %v1300 = vunpack.c.l.b16 %v1078
    %v1301 = vunpack.c.h.b16 %v1078
    %v1302 = vunpack.c.l.b16 %v1079
    %v1303 = vunpack.c.h.b16 %v1079
    %v1304 = vunpack.c.l.b16 %v1080
    %v1305 = vunpack.c.h.b16 %v1080
    %v1306 = vunpack.c.l.b16 %v1081
    %v1307 = vunpack.c.h.b16 %v1081
    %v1308 = vunpack.c.l.b16 %v1082
    %v1309 = vunpack.c.h.b16 %v1082
    %v1310 = vunpack.c.l.b16 %v1083
    %v1311 = vunpack.c.h.b16 %v1083
    %v1312 = vunpack.c.l.b16 %v1084
    %v1313 = vunpack.c.h.b16 %v1084
    %v1314 = vunpack.c.l.b16 %v1085
    %v1315 = vunpack.c.h.b16 %v1085
    %v1316 = vunpack.c.l.b16 %v1086
    %v1317 = vunpack.c.h.b16 %v1086
    %v1318 = vunpack.c.l.b16 %v1087
    %v1319 = vunpack.c.h.b16 %v1087
    %v1320 = vunpack.c.l.b16 %v1088
    %v1321 = vunpack.c.h.b16 %v1088
    %v1322 = vunpack.c.l.b16 %v1089
    %v1323 = vunpack.c.h.b16 %v1089
    %v1324 = vpack.c.b16 %v1204, %v1196
    %v1325 = vpack.c.b16 %v1205, %v1197
    %v1326 = vpack.c.b16 %v1206, %v1198
    %v1327 = vpack.c.b16 %v1207, %v1199
    %v1328 = vpack.c.b16 %v1208, %v1200
    %v1329 = vpack.c.b16 %v1209, %v1201
    %v1330 = vpack.c.b16 %v1210, %v1202
    %v1331 = vpack.c.b16 %v1211, %v1203
    %v1332 = vpack.c.b16 %v1220, %v1212
    %v1333 = vpack.c.b16 %v1221, %v1213
    %v1334 = vpack.c.b16 %v1222, %v1214
    %v1335 = vpack.c.b16 %v1223, %v1215
    %v1336 = vpack.c.b16 %v1224, %v1216
    %v1337 = vpack.c.b16 %v1225, %v1217
    %v1338 = vpack.c.b16 %v1226, %v1218
    %v1339 = vpack.c.b16 %v1227, %v1219
    %v1340 = vpack.c.b16 %v1236, %v1228
    %v1341 = vpack.c.b16 %v1237, %v1229
    %v1342 = vpack.c.b16 %v1238, %v1230
    %v1343 = vpack.c.b16 %v1239, %v1231
    %v1344 = vpack.c.b16 %v1240, %v1232
    %v1345 = vpack.c.b16 %v1241, %v1233
    %v1346 = vpack.c.b16 %v1242, %v1234
    %v1347 = vpack.c.b16 %v1243, %v1235
    %v1348 = vpack.c.b16 %v1252, %v1244
    %v1349 = vpack.c.b16 %v1253, %v1245
    %v1350 = vpack.c.b16 %v1254, %v1246
    %v1351 = vpack.c.b16 %v1255, %v1247
    %v1352 = vpack.c.b16 %v1256, %v1248
    %v1353 = vpack.c.b16 %v1257, %v1249
    %v1354 = vpack.c.b16 %v1258, %v1250
    %v1355 = vpack.c.b16 %v1259, %v1251
    %v1356 = vpack.c.b16 %v1268, %v1260
    %v1357 = vpack.c.b16 %v1269, %v1261
    %v1358 = vpack.c.b16 %v1270, %v1262
    %v1359 = vpack.c.b16 %v1271, %v1263
    %v1360 = vpack.c.b16 %v1272, %v1264
    %v1361 = vpack.c.b16 %v1273, %v1265
    %v1362 = vpack.c.b16 %v1274, %v1266
    %v1363 = vpack.c.b16 %v1275, %v1267
    %v1364 = vpack.c.b16 %v1284, %v1276
    %v1365 = vpack.c.b16 %v1285, %v1277
    %v1366 = vpack.c.b16 %v1286, %v1278
    %v1367 = vpack.c.b16 %v1287, %v1279
    %v1368 = vpack.c.b16 %v1288, %v1280
    %v1369 = vpack.c.b16 %v1289, %v1281
    %v1370 = vpack.c.b16 %v1290, %v1282
    %v1371 = vpack.c.b16 %v1291, %v1283
    %v1372 = vpack.c.b16 %v1300, %v1292
    %v1373 = vpack.c.b16 %v1301, %v1293
    %v1374 = vpack.c.b16 %v1302, %v1294
    %v1375 = vpack.c.b16 %v1303, %v1295
    %v1376 = vpack.c.b16 %v1304, %v1296
    %v1377 = vpack.c.b16 %v1305, %v1297
    %v1378 = vpack.c.b16 %v1306, %v1298
    %v1379 = vpack.c.b16 %v1307, %v1299
    %v1380 = vpack.c.b16 %v1316, %v1308
    %v1381 = vpack.c.b16 %v1317, %v1309
    %v1382 = vpack.c.b16 %v1318, %v1310
    %v1383 = vpack.c.b16 %v1319, %v1311
    %v1384 = vpack.c.b16 %v1320, %v1312
    %v1385 = vpack.c.b16 %v1321, %v1313
    %v1386 = vpack.c.b16 %v1322, %v1314
    %v1387 = vpack.c.b16 %v1323, %v1315
    %1452 = vmatprep.subr.bf16.mxu0 %v1325
    %1453 = vmatpush1.bf16.msra.mxu0 %v1324
    %1454 = vmatprep.subr.bf16.mxu0 %v1333
    %1455 = vmatpush1.bf16.msra.mxu0 %v1332
    %1456 = vmatprep.subr.bf16.mxu0 %v1341
    %1457 = vmatpush1.bf16.msra.mxu0 %v1340
    %1458 = vmatprep.subr.bf16.mxu0 %v1349
    %1459 = vmatpush1.bf16.msra.mxu0 %v1348
    %1460 = vmatprep.subr.bf16.mxu0 %v1357
    %1461 = vmatpush1.bf16.msra.mxu0 %v1356
    %1462 = vmatprep.subr.bf16.mxu0 %v1365
    %1463 = vmatpush1.bf16.msra.mxu0 %v1364
    %1464 = vmatprep.subr.bf16.mxu0 %v1373
    %1465 = vmatpush1.bf16.msra.mxu0 %v1372
    %1466 = vmatprep.subr.bf16.mxu0 %v1381
    %1467 = vmatpush1.bf16.msra.mxu0 %v1380
    %1468 = vmatprep.subr.bf16.mxu0 0
    %1469 = vmatpush1.bf16.msra.mxu0 0
    %1470 = vmatprep.subr.bf16.mxu0 0
    %1471 = vmatpush1.bf16.msra.mxu0 0
    %1472 = vmatprep.subr.bf16.mxu0 0
    %1473 = vmatpush1.bf16.msra.mxu0 0
    %1474 = vmatprep.subr.bf16.mxu0 0
    %1475 = vmatpush1.bf16.msra.mxu0 0
    %1476 = vmatprep.subr.bf16.mxu0 0
    %1477 = vmatpush1.bf16.msra.mxu0 0
    %1478 = vmatprep.subr.bf16.mxu0 0
    %1479 = vmatpush1.bf16.msra.mxu0 0
    %1480 = vmatprep.subr.bf16.mxu0 0
    %1481 = vmatpush1.bf16.msra.mxu0 0
    %1482 = vmatprep.subr.bf16.mxu0 0
    %1483 = vmatpush1.bf16.msra.mxu0 0
    %1484 = vmatprep.mubr.bf16.mxu0 0
    %1485 = vmatmul.mubr.bf16.gmra.mrb[0].mxu0 %v1025
    %v1486 = vpop.f32.mrb[0].mxu0
    %v1487 = vadd.f32 %v1095, %v1486
    %v1488 = vpop.f32.mrb[0].mxu0
    %v1489 = vadd.f32 %v1099, %v1488
    %v1490 = vpop.f32.mrb[0].mxu0
    %v1491 = vpop.f32.mrb[0].mxu0
    %1492 = vdwg.mxu0
    %1493 = vmatprep.subr.bf16.mxu0 %v1327
    %1494 = vmatpush1.bf16.msra.mxu0 %v1326
    %1495 = vmatprep.subr.bf16.mxu0 %v1335
    %1496 = vmatpush1.bf16.msra.mxu0 %v1334
    %1497 = vmatprep.subr.bf16.mxu0 %v1343
    %1498 = vmatpush1.bf16.msra.mxu0 %v1342
    %1499 = vmatprep.subr.bf16.mxu0 %v1351
    %1500 = vmatpush1.bf16.msra.mxu0 %v1350
    %1501 = vmatprep.subr.bf16.mxu0 %v1359
    %1502 = vmatpush1.bf16.msra.mxu0 %v1358
    %1503 = vmatprep.subr.bf16.mxu0 %v1367
    %1504 = vmatpush1.bf16.msra.mxu0 %v1366
    %1505 = vmatprep.subr.bf16.mxu0 %v1375
    %1506 = vmatpush1.bf16.msra.mxu0 %v1374
    %1507 = vmatprep.subr.bf16.mxu0 %v1383
    %1508 = vmatpush1.bf16.msra.mxu0 %v1382
    %1509 = vmatprep.subr.bf16.mxu0 0
    %1510 = vmatpush1.bf16.msra.mxu0 0
    %1511 = vmatprep.subr.bf16.mxu0 0
    %1512 = vmatpush1.bf16.msra.mxu0 0
    %1513 = vmatprep.subr.bf16.mxu0 0
    %1514 = vmatpush1.bf16.msra.mxu0 0
    %1515 = vmatprep.subr.bf16.mxu0 0
    %1516 = vmatpush1.bf16.msra.mxu0 0
    %1517 = vmatprep.subr.bf16.mxu0 0
    %1518 = vmatpush1.bf16.msra.mxu0 0
    %1519 = vmatprep.subr.bf16.mxu0 0
    %1520 = vmatpush1.bf16.msra.mxu0 0
    %1521 = vmatprep.subr.bf16.mxu0 0
    %1522 = vmatpush1.bf16.msra.mxu0 0
    %1523 = vmatprep.subr.bf16.mxu0 0
    %1524 = vmatpush1.bf16.msra.mxu0 0
    %1525 = vmatprep.mubr.bf16.mxu0 0
    %1526 = vmatmul.mubr.bf16.gmra.mrb[0].mxu0 %v1025
    %v1527 = vpop.f32.mrb[0].mxu0
    %v1528 = vadd.f32 %v1103, %v1527
    %v1529 = vpop.f32.mrb[0].mxu0
    %v1530 = vadd.f32 %v1107, %v1529
    %v1531 = vpop.f32.mrb[0].mxu0
    %v1532 = vpop.f32.mrb[0].mxu0
    %1533 = vdwg.mxu0
    %1534 = vmatprep.subr.bf16.mxu0 %v1329
    %1535 = vmatpush1.bf16.msra.mxu0 %v1328
    %1536 = vmatprep.subr.bf16.mxu0 %v1337
    %1537 = vmatpush1.bf16.msra.mxu0 %v1336
    %1538 = vmatprep.subr.bf16.mxu0 %v1345
    %1539 = vmatpush1.bf16.msra.mxu0 %v1344
    %1540 = vmatprep.subr.bf16.mxu0 %v1353
    %1541 = vmatpush1.bf16.msra.mxu0 %v1352
    %1542 = vmatprep.subr.bf16.mxu0 %v1361
    %1543 = vmatpush1.bf16.msra.mxu0 %v1360
    %1544 = vmatprep.subr.bf16.mxu0 %v1369
    %1545 = vmatpush1.bf16.msra.mxu0 %v1368
    %1546 = vmatprep.subr.bf16.mxu0 %v1377
    %1547 = vmatpush1.bf16.msra.mxu0 %v1376
    %1548 = vmatprep.subr.bf16.mxu0 %v1385
    %1549 = vmatpush1.bf16.msra.mxu0 %v1384
    %1550 = vmatprep.subr.bf16.mxu0 0
    %1551 = vmatpush1.bf16.msra.mxu0 0
    %1552 = vmatprep.subr.bf16.mxu0 0
    %1553 = vmatpush1.bf16.msra.mxu0 0
    %1554 = vmatprep.subr.bf16.mxu0 0
    %1555 = vmatpush1.bf16.msra.mxu0 0
    %1556 = vmatprep.subr.bf16.mxu0 0
    %1557 = vmatpush1.bf16.msra.mxu0 0
    %1558 = vmatprep.subr.bf16.mxu0 0
    %1559 = vmatpush1.bf16.msra.mxu0 0
    %1560 = vmatprep.subr.bf16.mxu0 0
    %1561 = vmatpush1.bf16.msra.mxu0 0
    %1562 = vmatprep.subr.bf16.mxu0 0
    %1563 = vmatpush1.bf16.msra.mxu0 0
    %1564 = vmatprep.subr.bf16.mxu0 0
    %1565 = vmatpush1.bf16.msra.mxu0 0
    %1566 = vmatprep.mubr.bf16.mxu0 0
    %1567 = vmatmul.mubr.bf16.gmra.mrb[0].mxu0 %v1025
    %v1568 = vpop.f32.mrb[0].mxu0
    %v1569 = vadd.f32 %v1111, %v1568
    %v1570 = vpop.f32.mrb[0].mxu0
    %v1571 = vadd.f32 %v1115, %v1570
    %v1572 = vpop.f32.mrb[0].mxu0
    %v1573 = vpop.f32.mrb[0].mxu0
    %1574 = vdwg.mxu0
    %1575 = vmatprep.subr.bf16.mxu0 %v1331
    %1576 = vmatpush1.bf16.msra.mxu0 %v1330
    %1577 = vmatprep.subr.bf16.mxu0 %v1339
    %1578 = vmatpush1.bf16.msra.mxu0 %v1338
    %1579 = vmatprep.subr.bf16.mxu0 %v1347
    %1580 = vmatpush1.bf16.msra.mxu0 %v1346
    %1581 = vmatprep.subr.bf16.mxu0 %v1355
    %1582 = vmatpush1.bf16.msra.mxu0 %v1354
    %1583 = vmatprep.subr.bf16.mxu0 %v1363
    %1584 = vmatpush1.bf16.msra.mxu0 %v1362
    %1585 = vmatprep.subr.bf16.mxu0 %v1371
    %1586 = vmatpush1.bf16.msra.mxu0 %v1370
    %1587 = vmatprep.subr.bf16.mxu0 %v1379
    %1588 = vmatpush1.bf16.msra.mxu0 %v1378
    %1589 = vmatprep.subr.bf16.mxu0 %v1387
    %1590 = vmatpush1.bf16.msra.mxu0 %v1386
    %1591 = vmatprep.subr.bf16.mxu0 0
    %1592 = vmatpush1.bf16.msra.mxu0 0
    %1593 = vmatprep.subr.bf16.mxu0 0
    %1594 = vmatpush1.bf16.msra.mxu0 0
    %1595 = vmatprep.subr.bf16.mxu0 0
    %1596 = vmatpush1.bf16.msra.mxu0 0
    %1597 = vmatprep.subr.bf16.mxu0 0
    %1598 = vmatpush1.bf16.msra.mxu0 0
    %1599 = vmatprep.subr.bf16.mxu0 0
    %1600 = vmatpush1.bf16.msra.mxu0 0
    %1601 = vmatprep.subr.bf16.mxu0 0
    %1602 = vmatpush1.bf16.msra.mxu0 0
    %1603 = vmatprep.subr.bf16.mxu0 0
    %1604 = vmatpush1.bf16.msra.mxu0 0
    %1605 = vmatprep.subr.bf16.mxu0 0
    %1606 = vmatpush1.bf16.msra.mxu0 0
    %1607 = vmatprep.mubr.bf16.mxu0 0
    %1608 = vmatmul.mubr.bf16.gmra.mrb[0].mxu0 %v1025
    %v1609 = vpop.f32.mrb[0].mxu0
    %v1610 = vadd.f32 %v1119, %v1609
    %v1611 = vpop.f32.mrb[0].mxu0
    %v1612 = vadd.f32 %v1123, %v1611
    %v1613 = vpop.f32.mrb[0].mxu0
    %v1614 = vpop.f32.mrb[0].mxu0
    %1615 = vdwg.mxu0
    %v1616 = vpack.c.bf16 %v1487, %v1487
    %v1617 = vpack.c.bf16 %v1489, %v1489
    %v1618 = vpack.c.bf16 %v1528, %v1528
    %v1619 = vpack.c.bf16 %v1530, %v1530
    %v1620 = vpack.c.bf16 %v1569, %v1569
    %v1621 = vpack.c.bf16 %v1571, %v1571
    %v1622 = vpack.c.bf16 %v1610, %v1610
    %v1623 = vpack.c.bf16 %v1612, %v1612
    %v1632 = vunpack.c.l.b16 %v1616
    %v1633 = vunpack.c.l.b16 %v1617
    %v1634 = vunpack.c.l.b16 %v1618
    %v1635 = vunpack.c.l.b16 %v1619
    %v1636 = vunpack.c.l.b16 %v1620
    %v1637 = vunpack.c.l.b16 %v1621
    %v1638 = vunpack.c.l.b16 %v1622
    %v1639 = vunpack.c.l.b16 %v1623
    %v1640 = vpack.c.b16 %v1633, %v1632
    %v1641 = vpack.c.b16 %v1635, %v1634
    %v1642 = vpack.c.b16 %v1637, %v1636
    %v1643 = vpack.c.b16 %v1639, %v1638
    %1648 = vst [vmem:[#allocation12] sm:$0xff] %v1640
    %1649 = vst [vmem:[#allocation12 + $0x8] sm:$0xff] %v1641
    %1650 = vst [vmem:[#allocation12 + $0x10] sm:$0xff] %v1642
    %1651 = vst [vmem:[#allocation12 + $0x18] sm:$0xff] %v1643
    // Predicated region
    $region58: #{tpu_custom_call.1} parent=1 // pred_check
      _
    $region59: #{tpu_custom_call.1} parent=1 // pred_check_branch
      %1653 = sbr.rel (0) target = $region61
    $region60: #{tpu_custom_call.1} parent=1 // pred_region
      %s1655 = ssub.s32 128, 128
      %1656 = vsyncadd [#allocation4], %s1655
      %s1658 = sshll.u32 [#allocation11], 4
      %s1659 = int_to_ptr.vmem [resolvable:$true] %s1658
      %1661 = dma.vmem_to_hbm [thread:$0]  %s1659, 128, %s9, [#allocation4]
    $region61: #{tpu_custom_call.1} parent=1 // pred_fallthru
      _
    // Predicated region
    $region62: #{tpu_custom_call.1} parent=1 // pred_check
      _
    $region63: #{tpu_custom_call.1} parent=1 // pred_check_branch
      %1663 = sbr.rel (0) target = $region65
    $region64: #{tpu_custom_call.1} parent=1 // pred_region
      %s1665 = ssub.s32 512, 512
      %1666 = vsyncadd [#allocation13], %s1665
      %s1668 = sshll.u32 [#allocation12], 4
      %s1669 = int_to_ptr.vmem [resolvable:$true] %s1668
      %1671 = dma.vmem_to_hbm [thread:$0]  %s1669, 512, %s10, [#allocation13]
    $region65: #{tpu_custom_call.1} parent=1 // pred_fallthru
      _
    // Predicated region
    $region66: #{tpu_custom_call.1} parent=1 // pred_check
      _
    $region67: #{tpu_custom_call.1} parent=1 // pred_check_branch
      %1673 = sbr.rel (0) target = $region69
    $region68: #{tpu_custom_call.1} parent=1 // pred_region
      %1674 = dma.done [#allocation4], 128
    $region69: #{tpu_custom_call.1} parent=1 // pred_fallthru
      _
    // Predicated region
    $region70: #{tpu_custom_call.1} parent=1 // pred_check
      _
    $region71: #{tpu_custom_call.1} parent=1 // pred_check_branch
      %1676 = sbr.rel (0) target = $region73
    $region72: #{tpu_custom_call.1} parent=1 // pred_region
      %1677 = dma.done [#allocation13], 512
    $region73: #{tpu_custom_call.1} parent=1 // pred_fallthru
      _
    %1678 = vsyncpa [#allocation3], 1
    %1679 = vsyncpa [#allocation6], 1
    %1680 = vsyncpa [#allocation9], 1
    %1681 = vsyncpa [#allocation4], 1
    %1682 = vsyncpa [#allocation13], 1

</llo_original>
